<compile_context>
chip_gen: v6e
topology: v6e:2x2x1
jax: 0.10.0
libtpu: 0.0.40
codegen_flags: <defaults>
</compile_context>

<pallas_src>
import functools

import jax
import jax.numpy as jnp
from jax import lax
from jax.experimental import pallas as pl
from jax.experimental.pallas import tpu as pltpu

_RING = 4  # x1 plane ring: 3 live planes + 1 prefetch target


def _round_up(x, m):
    return (x + m - 1) // m * m


def _upconv_kernel(wp, x1_hbm, x2_ref, wt_ref, bt_ref, w1_ref, b1_ref,
                   o_ref, ring, stack, sems):
    """One output depth plane of UpConv.

    Layouts (channels on sublanes, flattened padded H*W spatial on lanes):
      x1_hbm : (N, Dp, Cp, LP)  bf16  padded x1, raw HBM ref (manual DMA ring)
      x2_ref : (1, 1, Cp, MR)   bf16
      wt_ref : (Cp, 27*Cp)      bf16  fused flipped convT taps [co, tap*Cp+ci]
      bt_ref : (Cp, 1)          f32
      w1_ref : (Cout, 2*Cp)     bf16  1x1 conv, [w1a | w1b]
      b1_ref : (Cout, 1)        f32
      o_ref  : (1, Cout, MR)    bf16
      ring   : (_RING, Cp, LP)  bf16  rolling x1 plane cache
      stack  : (27*Cp, MR)      bf16  stacked RHS of the fused tap GEMM
      sems   : DMA semaphores, one per ring slot
    """
    n = pl.program_id(0)
    d = pl.program_id(1)
    n_d = pl.num_programs(1)            # Do;  padded depth Dp = Do + 2
    cp = ring.shape[1]
    mr = stack.shape[1]

    def plane_copy(plane, slot):
        return pltpu.make_async_copy(x1_hbm.at[n, plane], ring.at[slot],
                                     sems.at[slot])

    # ---- rolling ring: DMA exactly one new padded plane per step -----------
    @pl.when(d == 0)
    def _prime():                       # new batch item: planes 0, 1, 2
        plane_copy(0, 0).start()
        plane_copy(1, 1).start()
        plane_copy(2, 2).start()

    @pl.when(d + 1 < n_d)               # plane d+3 exists iff d + 3 < Dp
    def _prefetch():                    # fetched now, consumed at step d + 1
        plane_copy(d + 3, (d + 3) % _RING).start()

    @pl.when(d == 0)
    def _wait_prime():
        plane_copy(0, 0).wait()
        plane_copy(1, 1).wait()
    plane_copy(d + 2, (d + 2) % _RING).wait()

    # ---- build the (27*Cp, MR) stacked RHS once (single lane-shift pass) ---
    for kd in range(3):
        plane = ring.at[(d + kd) % _RING]              # (Cp, LP) view
        for kh in range(3):
            for kw in range(3):
                t = (kd * 3 + kh) * 3 + kw
                stack[pl.ds(t * cp, cp), :] = plane[:, pl.ds(kh * wp + kw, mr)]

    # ---- single K = 27*Cp GEMM: accumulation stays inside the MXU ----------
    acc = jnp.dot(wt_ref[...], stack[...], preferred_element_type=jnp.float32)

    # torch: x = relu(cat([x2, convT(x1)], ch)); x = Conv3d(2C->Cout,1)(x); relu
    x1r = jnp.maximum(acc + bt_ref[...], 0.0).astype(jnp.bfloat16)
    x2r = jnp.maximum(x2_ref[0, 0], 0).astype(jnp.bfloat16)

    # ---- fused 1x1 epilogue: one GEMM with K = 2*Cp -------------------------
    cat = jnp.concatenate([x2r, x1r], axis=0)                  # (2*Cp, MR)
    y = jnp.dot(w1_ref[...], cat,
                preferred_element_type=jnp.float32) + b1_ref[...]
    o_ref[0] = jnp.maximum(y, 0.0).astype(o_ref.dtype)


def upconv_forward(x1, x2, params):
    """x1, x2: float32 NCDHW.  Returns bf16 NCDHW output (N, out_ch, Do, Ho, Wo)."""
    wt, bt, w1, b1 = params["wT"], params["bT"], params["w1"], params["b1"]
    N, in_ch, D1, H1, W1 = x1.shape
    out_ch = w1.shape[0]

    Do, Ho, Wo = D1 + 2, H1 + 2, W1 + 2        # ConvTranspose3d k=3, s=1, p=0
    Dp, Wp = Do + 2, Wo + 2                    # conv pad = 2
    Cp = _round_up(in_ch, 16)                  # bf16 packed-sublane aligned chans
    MR = _round_up(Ho * Wp, 128)               # lane-dense flattened output plane
    LP = _round_up(MR + 2 * Wp + 2, 128)       # padded plane length incl. guard

    # Quirky F.pad in the torch module: diffY/diffX are computed from D/H but
    # applied to W/H.  torch.cat(dim=1) only type-checks when both diffs are 0
    # (x2 spatial == x1 spatial + 2), so the pad is a no-op here.
    # TODO(synk): the general (diff != 0) F.pad branch is unreachable in the
    # torch module (cat would fail), so it is not lowered here.
    assert x2.shape == (N, in_ch, Do, Ho, Wo), (
        "torch.cat in the reference module requires x2 spatial == x1 spatial + 2")

    # ---- operand prep: channels (padded to Cp) on sublanes, flat spatial lanes
    x1p = jnp.pad(x1, ((0, 0), (0, Cp - in_ch), (2, 2), (2, 2), (2, 2)))
    x1p = jnp.transpose(x1p, (0, 2, 1, 3, 4)).reshape(N, Dp, Cp, (Ho + 2) * Wp)
    x1p = jnp.pad(x1p, ((0, 0), (0, 0), (0, 0), (0, LP - (Ho + 2) * Wp)))
    x1p = x1p.astype(jnp.bfloat16)

    x2p = jnp.pad(x2, ((0, 0), (0, Cp - in_ch), (0, 0), (0, 0), (0, Wp - Wo)))
    x2p = jnp.transpose(x2p, (0, 2, 1, 3, 4)).reshape(N, Do, Cp, Ho * Wp)
    x2p = jnp.pad(x2p, ((0, 0), (0, 0), (0, 0), (0, MR - Ho * Wp)))
    x2p = x2p.astype(jnp.bfloat16)

    # ConvTranspose weight (Cin, Cin, 3,3,3) -> one fused [co, tap*Cp+ci] matrix
    # (spatially flipped, zero-padded to Cp channels).
    w_eq = jnp.transpose(wt[:, :, ::-1, ::-1, ::-1], (2, 3, 4, 1, 0))  # (3,3,3,co,ci)
    w_eq = jnp.pad(w_eq, ((0, 0),) * 3 + ((0, Cp - in_ch), (0, Cp - in_ch)))
    wt_big = jnp.transpose(w_eq.reshape(27, Cp, Cp), (1, 0, 2)).reshape(Cp, 27 * Cp)
    wt_big = wt_big.astype(jnp.bfloat16)
    bt_col = jnp.pad(bt, (0, Cp - in_ch)).reshape(Cp, 1).astype(jnp.float32)

    # 1x1 conv: [w1a | w1b] so relu(cat([x2, convT(x1)])) is one K = 2*Cp GEMM.
    w1_2d = w1.reshape(out_ch, 2 * in_ch)
    w1a = jnp.pad(w1_2d[:, :in_ch], ((0, 0), (0, Cp - in_ch)))
    w1b = jnp.pad(w1_2d[:, in_ch:], ((0, 0), (0, Cp - in_ch)))
    w1_cat = jnp.concatenate([w1a, w1b], axis=1).astype(jnp.bfloat16)
    b1_col = b1.reshape(out_ch, 1).astype(jnp.float32)

    # ---- VMEM budget: request only what blocks + scratch actually need ------
    est = (_RING * Cp * LP * 2 + 27 * Cp * MR * 2            # ring + stacked RHS
           + 2 * Cp * MR * 2 + 2 * out_ch * MR * 2           # x2 / out dbl-buffers
           + Cp * MR * 4 + 2 * Cp * MR * 2 + out_ch * MR * 4  # in-body temps
           + 2 * (27 * Cp * Cp + 2 * Cp * out_ch) * 2 + (Cp + out_ch) * 4)
    vmem_limit = int(min(max(2 * est, 8 * 2 ** 20), 48 * 2 ** 20))

    kernel = functools.partial(_upconv_kernel, Wp)

    out_flat = pl.pallas_call(
        kernel,
        out_shape=jax.ShapeDtypeStruct((N, out_ch, Do * MR), jnp.bfloat16),
        grid_spec=pltpu.PrefetchScalarGridSpec(
            num_scalar_prefetch=0,
            grid=(N, Do),
            in_specs=[
                pl.BlockSpec(memory_space=pl.ANY),                        # x1p (HBM)
                pl.BlockSpec((1, 1, Cp, MR), lambda n, d: (n, d, 0, 0)),  # x2p
                pl.BlockSpec((Cp, 27 * Cp), lambda n, d: (0, 0)),         # taps
                pl.BlockSpec((Cp, 1), lambda n, d: (0, 0)),               # bT
                pl.BlockSpec((out_ch, 2 * Cp), lambda n, d: (0, 0)),      # [w1a|w1b]
                pl.BlockSpec((out_ch, 1), lambda n, d: (0, 0)),           # b1
            ],
            out_specs=pl.BlockSpec((1, out_ch, MR), lambda n, d: (n, 0, d)),
            scratch_shapes=[
                pltpu.VMEM((_RING, Cp, LP), jnp.bfloat16),   # x1 plane ring
                pltpu.VMEM((27 * Cp, MR), jnp.bfloat16),     # stacked tap RHS
                pltpu.SemaphoreType.DMA((_RING,)),
            ],
        ),
        compiler_params=pltpu.CompilerParams(
            # depth carries the ring state -> "arbitrary"; batch stays parallel
            # (megacore on v7x).  TODO(synk): when N == 1 on v7x, split Do into
            # per-core halves in the wrapper to keep both TensorCores busy.
            dimension_semantics=("parallel", "arbitrary"),
            vmem_limit_bytes=vmem_limit,
        ),
    )(x1p, x2p, wt_big, bt_col, w1_cat, b1_col)

    # Drop lane / garbage-column padding; layout is already N, C, D, H, W.
    out = out_flat.reshape(N, out_ch, Do, MR)[:, :, :, :Ho * Wp]
    out = out.reshape(N, out_ch, Do, Ho, Wp)[:, :, :, :, :Wo]
    return out


def upconv_reference(x1, x2, params):
    """Pure-JAX f32 reference of the torch forward (NCDHW in / NCDHW out)."""
    wt, bt, w1, b1 = params["wT"], params["bT"], params["w1"], params["b1"]
    out_ch, in2 = w1.shape[0], w1.shape[1]
    x1n = jnp.transpose(x1, (0, 2, 3, 4, 1))
    x2n = jnp.transpose(x2, (0, 2, 3, 4, 1))
    w_eq = jnp.transpose(wt[:, :, ::-1, ::-1, ::-1], (2, 3, 4, 0, 1))
    y1 = lax.conv_general_dilated(
        x1n, w_eq, window_strides=(1, 1, 1), padding=[(2, 2)] * 3,
        dimension_numbers=("NDHWC", "DHWIO", "NDHWC"),
        precision=lax.Precision.HIGHEST) + bt.reshape(1, 1, 1, 1, -1)
    cat = jnp.maximum(jnp.concatenate([x2n, y1], axis=-1), 0.0)
    w1m = jnp.transpose(w1.reshape(out_ch, in2), (1, 0))
    y = jnp.einsum("ndhwc,cf->ndhwf", cat, w1m,
                   precision=lax.Precision.HIGHEST) + b1.reshape(1, 1, 1, 1, -1)
    y = jnp.maximum(y, 0.0)
    return jnp.transpose(y, (0, 4, 1, 2, 3))


if __name__ == "__main__":
    key = jax.random.PRNGKey(0)
    k1, k2, k3, k4, k5, k6 = jax.random.split(key, 6)

    N, in_ch, out_ch = 2, 4, 8
    S1 = 6            # x1 spatial
    S2 = S1 + 2       # x2 spatial (required by the module's cat)

    x1 = jax.random.normal(k1, (N, in_ch, S1, S1, S1), jnp.float32)
    x2 = jax.random.normal(k2, (N, in_ch, S2, S2, S2), jnp.float32)

    params = dict(
        # ConvTranspose3d(in_ch, in_ch, 3): weight (in_ch, in_ch, 3,3,3) + bias
        wT=0.1 * jax.random.normal(k3, (in_ch, in_ch, 3, 3, 3), jnp.float32),
        bT=0.1 * jax.random.normal(k4, (in_ch,), jnp.float32),
        # Conv3d(2*in_ch, out_ch, 1): weight (out_ch, 2*in_ch, 1,1,1) + bias
        w1=0.1 * jax.random.normal(k5, (out_ch, 2 * in_ch, 1, 1, 1), jnp.float32),
        b1=0.1 * jax.random.normal(k6, (out_ch,), jnp.float32),
    )

    out = upconv_forward(x1, x2, params)
    out = jax.block_until_ready(out)
    assert out.shape == (N, out_ch, S2, S2, S2), out.shape

    # The kernel deliberately quantizes activations/weights (and the output) to
    # bf16 as a bandwidth optimization, so the reference is fed the same
    # bf16-rounded inputs but computed in f32 — this isolates kernel-math
    # correctness; residual deviation is bf16 rounding (~1e-2).
    def _q(a):
        return a.astype(jnp.bfloat16).astype(jnp.float32)

    params_q = dict(wT=_q(params["wT"]), bT=params["bT"],
                    w1=_q(params["w1"]), b1=params["b1"])
    ref = upconv_reference(_q(x1), _q(x2), params_q)
    out_f32 = out.astype(jnp.float32)
    if not jnp.allclose(out_f32, ref, atol=3e-2, rtol=3e-2):
        max_err = float(jnp.max(jnp.abs(out_f32 - ref)))
        raise AssertionError(
            f"Pallas output mismatch vs reference, max abs err {max_err}")

    print("KERNEL_OK")
</pallas_src>

<mosaic_0001>
module attributes {stable_mosaic.version = 11 : i64} {
  func.func @_upconv_kernel(%arg0: i32, %arg1: i32, %arg2: memref<2x10x16x256xbf16, #tpu.memory_space<any>>, %arg3: memref<1x1x16x128xbf16, #tpu.memory_space<vmem>>, %arg4: memref<16x432xbf16, #tpu.memory_space<vmem>>, %arg5: memref<16x1xf32, #tpu.memory_space<vmem>>, %arg6: memref<8x32xbf16, #tpu.memory_space<vmem>>, %arg7: memref<8x1xf32, #tpu.memory_space<vmem>>, %arg8: memref<1x8x128xbf16, #tpu.memory_space<vmem>>, %arg9: memref<4x16x256xbf16, #tpu.memory_space<vmem>>, %arg10: memref<432x128xbf16, #tpu.memory_space<vmem>>, %arg11: memref<4x!tpu.dma_semaphore, #tpu.memory_space<semaphore_mem>>) attributes {dimension_semantics = [#tpu.dimension_semantics<parallel>, #tpu.dimension_semantics<arbitrary>], iteration_bounds = array<i64: 2, 8>, scalar_prefetch = 0 : i64, scratch_operands = 3 : i64, tpu.core_type = #tpu.core_type<tc>, window_params = [{}, {transform_indices = @transform_1, window_bounds = array<i64: 1, 1, 16, 128>}, {pipeline_mode = #tpu.pipeline_mode<synchronous>, transform_indices = @transform_2, window_bounds = array<i64: 16, 432>}, {pipeline_mode = #tpu.pipeline_mode<synchronous>, transform_indices = @transform_3, window_bounds = array<i64: 16, 1>}, {pipeline_mode = #tpu.pipeline_mode<synchronous>, transform_indices = @transform_4, window_bounds = array<i64: 8, 32>}, {pipeline_mode = #tpu.pipeline_mode<synchronous>, transform_indices = @transform_5, window_bounds = array<i64: 8, 1>}, {transform_indices = @transform_6, window_bounds = array<i64: 1, 8, 128>}]} {
    %c0_i32 = arith.constant 0 : i32
    %0 = arith.cmpi eq, %arg1, %c0_i32 : i32
    %1 = arith.extui %0 : i1 to i32
    %c0_i32_0 = arith.constant 0 : i32
    %2 = arith.cmpi ne, %1, %c0_i32_0 : i32
    scf.if %2 {
      %c0_i32_183 = arith.constant 0 : i32
      %c0_i32_184 = arith.constant 0 : i32
      %c0_i32_185 = arith.constant 0 : i32
      %c0_i32_186 = arith.constant 0 : i32
      %c0_i32_187 = arith.constant 0 : i32
      %194 = tpu.memref_slice %arg2[%arg0, %c0_i32_183, %c0_i32_186, %c0_i32_187] : memref<2x10x16x256xbf16, #tpu.memory_space<any>> -> memref<1x1x16x256xbf16, #tpu.memory_space<any>>
      %195 = tpu.memref_squeeze %194 : memref<1x1x16x256xbf16, #tpu.memory_space<any>> -> memref<16x256xbf16, #tpu.memory_space<any>>
      %c0_i32_188 = arith.constant 0 : i32
      %c0_i32_189 = arith.constant 0 : i32
      %196 = tpu.memref_slice %arg9[%c0_i32_184, %c0_i32_188, %c0_i32_189] : memref<4x16x256xbf16, #tpu.memory_space<vmem>> -> memref<1x16x256xbf16, #tpu.memory_space<vmem>>
      %197 = tpu.memref_squeeze %196 : memref<1x16x256xbf16, #tpu.memory_space<vmem>> -> memref<16x256xbf16, #tpu.memory_space<vmem>>
      %198 = tpu.memref_slice %arg11[%c0_i32_185] : memref<4x!tpu.dma_semaphore, #tpu.memory_space<semaphore_mem>> -> memref<1x!tpu.dma_semaphore, #tpu.memory_space<semaphore_mem>>
      %199 = tpu.memref_squeeze %198 : memref<1x!tpu.dma_semaphore, #tpu.memory_space<semaphore_mem>> -> memref<!tpu.dma_semaphore, #tpu.memory_space<semaphore_mem>>
      tpu.enqueue_dma source(%195 : memref<16x256xbf16, #tpu.memory_space<any>>) target(%197 : memref<16x256xbf16, #tpu.memory_space<vmem>>) target_semaphore(%199 : memref<!tpu.dma_semaphore, #tpu.memory_space<semaphore_mem>>)
      %c1_i32_190 = arith.constant 1 : i32
      %c1_i32_191 = arith.constant 1 : i32
      %c1_i32_192 = arith.constant 1 : i32
      %c0_i32_193 = arith.constant 0 : i32
      %c0_i32_194 = arith.constant 0 : i32
      %200 = tpu.memref_slice %arg2[%arg0, %c1_i32_190, %c0_i32_193, %c0_i32_194] : memref<2x10x16x256xbf16, #tpu.memory_space<any>> -> memref<1x1x16x256xbf16, #tpu.memory_space<any>>
      %201 = tpu.memref_squeeze %200 : memref<1x1x16x256xbf16, #tpu.memory_space<any>> -> memref<16x256xbf16, #tpu.memory_space<any>>
      %c0_i32_195 = arith.constant 0 : i32
      %c0_i32_196 = arith.constant 0 : i32
      %202 = tpu.memref_slice %arg9[%c1_i32_191, %c0_i32_195, %c0_i32_196] : memref<4x16x256xbf16, #tpu.memory_space<vmem>> -> memref<1x16x256xbf16, #tpu.memory_space<vmem>>
      %203 = tpu.memref_squeeze %202 : memref<1x16x256xbf16, #tpu.memory_space<vmem>> -> memref<16x256xbf16, #tpu.memory_space<vmem>>
      %204 = tpu.memref_slice %arg11[%c1_i32_192] : memref<4x!tpu.dma_semaphore, #tpu.memory_space<semaphore_mem>> -> memref<1x!tpu.dma_semaphore, #tpu.memory_space<semaphore_mem>>
      %205 = tpu.memref_squeeze %204 : memref<1x!tpu.dma_semaphore, #tpu.memory_space<semaphore_mem>> -> memref<!tpu.dma_semaphore, #tpu.memory_space<semaphore_mem>>
      tpu.enqueue_dma source(%201 : memref<16x256xbf16, #tpu.memory_space<any>>) target(%203 : memref<16x256xbf16, #tpu.memory_space<vmem>>) target_semaphore(%205 : memref<!tpu.dma_semaphore, #tpu.memory_space<semaphore_mem>>)
      %c2_i32_197 = arith.constant 2 : i32
      %c2_i32_198 = arith.constant 2 : i32
      %c2_i32_199 = arith.constant 2 : i32
      %c0_i32_200 = arith.constant 0 : i32
      %c0_i32_201 = arith.constant 0 : i32
      %206 = tpu.memref_slice %arg2[%arg0, %c2_i32_197, %c0_i32_200, %c0_i32_201] : memref<2x10x16x256xbf16, #tpu.memory_space<any>> -> memref<1x1x16x256xbf16, #tpu.memory_space<any>>
      %207 = tpu.memref_squeeze %206 : memref<1x1x16x256xbf16, #tpu.memory_space<any>> -> memref<16x256xbf16, #tpu.memory_space<any>>
      %c0_i32_202 = arith.constant 0 : i32
      %c0_i32_203 = arith.constant 0 : i32
      %208 = tpu.memref_slice %arg9[%c2_i32_198, %c0_i32_202, %c0_i32_203] : memref<4x16x256xbf16, #tpu.memory_space<vmem>> -> memref<1x16x256xbf16, #tpu.memory_space<vmem>>
      %209 = tpu.memref_squeeze %208 : memref<1x16x256xbf16, #tpu.memory_space<vmem>> -> memref<16x256xbf16, #tpu.memory_space<vmem>>
      %210 = tpu.memref_slice %arg11[%c2_i32_199] : memref<4x!tpu.dma_semaphore, #tpu.memory_space<semaphore_mem>> -> memref<1x!tpu.dma_semaphore, #tpu.memory_space<semaphore_mem>>
      %211 = tpu.memref_squeeze %210 : memref<1x!tpu.dma_semaphore, #tpu.memory_space<semaphore_mem>> -> memref<!tpu.dma_semaphore, #tpu.memory_space<semaphore_mem>>
      tpu.enqueue_dma source(%207 : memref<16x256xbf16, #tpu.memory_space<any>>) target(%209 : memref<16x256xbf16, #tpu.memory_space<vmem>>) target_semaphore(%211 : memref<!tpu.dma_semaphore, #tpu.memory_space<semaphore_mem>>)
    } else {
    }
    %c1_i32 = arith.constant 1 : i32
    %3 = arith.addi %arg1, %c1_i32 : i32
    %c8_i32 = arith.constant 8 : i32
    %4 = arith.cmpi slt, %3, %c8_i32 : i32
    %5 = arith.extui %4 : i1 to i32
    %c0_i32_1 = arith.constant 0 : i32
    %6 = arith.cmpi ne, %5, %c0_i32_1 : i32
    scf.if %6 {
      %c3_i32 = arith.constant 3 : i32
      %194 = arith.addi %arg1, %c3_i32 : i32
      %c3_i32_183 = arith.constant 3 : i32
      %195 = arith.addi %arg1, %c3_i32_183 : i32
      %c4_i32_184 = arith.constant 4 : i32
      %c0_i32_185 = arith.constant 0 : i32
      %196 = arith.cmpi eq, %c4_i32_184, %c0_i32_185 : i32
      %c1_i32_186 = arith.constant 1 : i32
      %197 = arith.select %196, %c1_i32_186, %c4_i32_184 : i32
      %198 = arith.remsi %195, %197 : i32
      %c0_i32_187 = arith.constant 0 : i32
      %199 = arith.cmpi ne, %198, %c0_i32_187 : i32
      %c0_i32_188 = arith.constant 0 : i32
      %200 = arith.cmpi slt, %198, %c0_i32_188 : i32
      %c0_i32_189 = arith.constant 0 : i32
      %201 = arith.cmpi slt, %197, %c0_i32_189 : i32
      %202 = arith.xori %200, %201 : i1
      %203 = arith.andi %202, %199 : i1
      %204 = arith.addi %198, %197 : i32
      %205 = arith.select %203, %204, %198 : i32
      %c0_i32_190 = arith.constant 0 : i32
      %c0_i32_191 = arith.constant 0 : i32
      %206 = tpu.memref_slice %arg2[%arg0, %194, %c0_i32_190, %c0_i32_191] : memref<2x10x16x256xbf16, #tpu.memory_space<any>> -> memref<1x1x16x256xbf16, #tpu.memory_space<any>>
      %207 = tpu.memref_squeeze %206 : memref<1x1x16x256xbf16, #tpu.memory_space<any>> -> memref<16x256xbf16, #tpu.memory_space<any>>
      %c0_i32_192 = arith.constant 0 : i32
      %c0_i32_193 = arith.constant 0 : i32
      %208 = tpu.memref_slice %arg9[%205, %c0_i32_192, %c0_i32_193] : memref<4x16x256xbf16, #tpu.memory_space<vmem>> -> memref<1x16x256xbf16, #tpu.memory_space<vmem>>
      %209 = tpu.memref_squeeze %208 : memref<1x16x256xbf16, #tpu.memory_space<vmem>> -> memref<16x256xbf16, #tpu.memory_space<vmem>>
      %210 = tpu.memref_slice %arg11[%205] : memref<4x!tpu.dma_semaphore, #tpu.memory_space<semaphore_mem>> -> memref<1x!tpu.dma_semaphore, #tpu.memory_space<semaphore_mem>>
      %211 = tpu.memref_squeeze %210 : memref<1x!tpu.dma_semaphore, #tpu.memory_space<semaphore_mem>> -> memref<!tpu.dma_semaphore, #tpu.memory_space<semaphore_mem>>
      tpu.enqueue_dma source(%207 : memref<16x256xbf16, #tpu.memory_space<any>>) target(%209 : memref<16x256xbf16, #tpu.memory_space<vmem>>) target_semaphore(%211 : memref<!tpu.dma_semaphore, #tpu.memory_space<semaphore_mem>>)
    } else {
    }
    %c0_i32_2 = arith.constant 0 : i32
    %7 = arith.cmpi eq, %arg1, %c0_i32_2 : i32
    %8 = arith.extui %7 : i1 to i32
    %c0_i32_3 = arith.constant 0 : i32
    %9 = arith.cmpi ne, %8, %c0_i32_3 : i32
    scf.if %9 {
      %c0_i32_183 = arith.constant 0 : i32
      %c0_i32_184 = arith.constant 0 : i32
      %c0_i32_185 = arith.constant 0 : i32
      %c0_i32_186 = arith.constant 0 : i32
      %c0_i32_187 = arith.constant 0 : i32
      %194 = tpu.memref_slice %arg2[%arg0, %c0_i32_183, %c0_i32_186, %c0_i32_187] : memref<2x10x16x256xbf16, #tpu.memory_space<any>> -> memref<1x1x16x256xbf16, #tpu.memory_space<any>>
      %195 = tpu.memref_squeeze %194 : memref<1x1x16x256xbf16, #tpu.memory_space<any>> -> memref<16x256xbf16, #tpu.memory_space<any>>
      %c0_i32_188 = arith.constant 0 : i32
      %c0_i32_189 = arith.constant 0 : i32
      %196 = tpu.memref_slice %arg9[%c0_i32_184, %c0_i32_188, %c0_i32_189] : memref<4x16x256xbf16, #tpu.memory_space<vmem>> -> memref<1x16x256xbf16, #tpu.memory_space<vmem>>
      %197 = tpu.memref_squeeze %196 : memref<1x16x256xbf16, #tpu.memory_space<vmem>> -> memref<16x256xbf16, #tpu.memory_space<vmem>>
      %198 = tpu.memref_slice %arg11[%c0_i32_185] : memref<4x!tpu.dma_semaphore, #tpu.memory_space<semaphore_mem>> -> memref<1x!tpu.dma_semaphore, #tpu.memory_space<semaphore_mem>>
      %199 = tpu.memref_squeeze %198 : memref<1x!tpu.dma_semaphore, #tpu.memory_space<semaphore_mem>> -> memref<!tpu.dma_semaphore, #tpu.memory_space<semaphore_mem>>
      tpu.wait_dma2 semaphore(%199 : memref<!tpu.dma_semaphore, #tpu.memory_space<semaphore_mem>>) src(%195 : memref<16x256xbf16, #tpu.memory_space<any>>) dst(%197 : memref<16x256xbf16, #tpu.memory_space<vmem>>)
      %c1_i32_190 = arith.constant 1 : i32
      %c1_i32_191 = arith.constant 1 : i32
      %c1_i32_192 = arith.constant 1 : i32
      %c0_i32_193 = arith.constant 0 : i32
      %c0_i32_194 = arith.constant 0 : i32
      %200 = tpu.memref_slice %arg2[%arg0, %c1_i32_190, %c0_i32_193, %c0_i32_194] : memref<2x10x16x256xbf16, #tpu.memory_space<any>> -> memref<1x1x16x256xbf16, #tpu.memory_space<any>>
      %201 = tpu.memref_squeeze %200 : memref<1x1x16x256xbf16, #tpu.memory_space<any>> -> memref<16x256xbf16, #tpu.memory_space<any>>
      %c0_i32_195 = arith.constant 0 : i32
      %c0_i32_196 = arith.constant 0 : i32
      %202 = tpu.memref_slice %arg9[%c1_i32_191, %c0_i32_195, %c0_i32_196] : memref<4x16x256xbf16, #tpu.memory_space<vmem>> -> memref<1x16x256xbf16, #tpu.memory_space<vmem>>
      %203 = tpu.memref_squeeze %202 : memref<1x16x256xbf16, #tpu.memory_space<vmem>> -> memref<16x256xbf16, #tpu.memory_space<vmem>>
      %204 = tpu.memref_slice %arg11[%c1_i32_192] : memref<4x!tpu.dma_semaphore, #tpu.memory_space<semaphore_mem>> -> memref<1x!tpu.dma_semaphore, #tpu.memory_space<semaphore_mem>>
      %205 = tpu.memref_squeeze %204 : memref<1x!tpu.dma_semaphore, #tpu.memory_space<semaphore_mem>> -> memref<!tpu.dma_semaphore, #tpu.memory_space<semaphore_mem>>
      tpu.wait_dma2 semaphore(%205 : memref<!tpu.dma_semaphore, #tpu.memory_space<semaphore_mem>>) src(%201 : memref<16x256xbf16, #tpu.memory_space<any>>) dst(%203 : memref<16x256xbf16, #tpu.memory_space<vmem>>)
    } else {
    }
    %c2_i32 = arith.constant 2 : i32
    %10 = arith.addi %arg1, %c2_i32 : i32
    %c2_i32_4 = arith.constant 2 : i32
    %11 = arith.addi %arg1, %c2_i32_4 : i32
    %c4_i32 = arith.constant 4 : i32
    %c0_i32_5 = arith.constant 0 : i32
    %12 = arith.cmpi eq, %c4_i32, %c0_i32_5 : i32
    %c1_i32_6 = arith.constant 1 : i32
    %13 = arith.select %12, %c1_i32_6, %c4_i32 : i32
    %14 = arith.remsi %11, %13 : i32
    %c0_i32_7 = arith.constant 0 : i32
    %15 = arith.cmpi ne, %14, %c0_i32_7 : i32
    %c0_i32_8 = arith.constant 0 : i32
    %16 = arith.cmpi slt, %14, %c0_i32_8 : i32
    %c0_i32_9 = arith.constant 0 : i32
    %17 = arith.cmpi slt, %13, %c0_i32_9 : i32
    %18 = arith.xori %16, %17 : i1
    %19 = arith.andi %18, %15 : i1
    %20 = arith.addi %14, %13 : i32
    %21 = arith.select %19, %20, %14 : i32
    %c0_i32_10 = arith.constant 0 : i32
    %c0_i32_11 = arith.constant 0 : i32
    %22 = tpu.memref_slice %arg2[%arg0, %10, %c0_i32_10, %c0_i32_11] : memref<2x10x16x256xbf16, #tpu.memory_space<any>> -> memref<1x1x16x256xbf16, #tpu.memory_space<any>>
    %23 = tpu.memref_squeeze %22 : memref<1x1x16x256xbf16, #tpu.memory_space<any>> -> memref<16x256xbf16, #tpu.memory_space<any>>
    %c0_i32_12 = arith.constant 0 : i32
    %c0_i32_13 = arith.constant 0 : i32
    %24 = tpu.memref_slice %arg9[%21, %c0_i32_12, %c0_i32_13] : memref<4x16x256xbf16, #tpu.memory_space<vmem>> -> memref<1x16x256xbf16, #tpu.memory_space<vmem>>
    %25 = tpu.memref_squeeze %24 : memref<1x16x256xbf16, #tpu.memory_space<vmem>> -> memref<16x256xbf16, #tpu.memory_space<vmem>>
    %26 = tpu.memref_slice %arg11[%21] : memref<4x!tpu.dma_semaphore, #tpu.memory_space<semaphore_mem>> -> memref<1x!tpu.dma_semaphore, #tpu.memory_space<semaphore_mem>>
    %27 = tpu.memref_squeeze %26 : memref<1x!tpu.dma_semaphore, #tpu.memory_space<semaphore_mem>> -> memref<!tpu.dma_semaphore, #tpu.memory_space<semaphore_mem>>
    tpu.wait_dma2 semaphore(%27 : memref<!tpu.dma_semaphore, #tpu.memory_space<semaphore_mem>>) src(%23 : memref<16x256xbf16, #tpu.memory_space<any>>) dst(%25 : memref<16x256xbf16, #tpu.memory_space<vmem>>)
    %c0_i32_14 = arith.constant 0 : i32
    %28 = arith.addi %arg1, %c0_i32_14 : i32
    %c4_i32_15 = arith.constant 4 : i32
    %c0_i32_16 = arith.constant 0 : i32
    %29 = arith.cmpi eq, %c4_i32_15, %c0_i32_16 : i32
    %c1_i32_17 = arith.constant 1 : i32
    %30 = arith.select %29, %c1_i32_17, %c4_i32_15 : i32
    %31 = arith.remsi %28, %30 : i32
    %c0_i32_18 = arith.constant 0 : i32
    %32 = arith.cmpi ne, %31, %c0_i32_18 : i32
    %c0_i32_19 = arith.constant 0 : i32
    %33 = arith.cmpi slt, %31, %c0_i32_19 : i32
    %c0_i32_20 = arith.constant 0 : i32
    %34 = arith.cmpi slt, %30, %c0_i32_20 : i32
    %35 = arith.xori %33, %34 : i1
    %36 = arith.andi %35, %32 : i1
    %37 = arith.addi %31, %30 : i32
    %38 = arith.select %36, %37, %31 : i32
    %c0_i32_21 = arith.constant 0 : i32
    %c0_i32_22 = arith.constant 0 : i32
    %39 = tpu.memref_slice %arg9[%38, %c0_i32_21, %c0_i32_22] : memref<4x16x256xbf16, #tpu.memory_space<vmem>> -> memref<1x16x256xbf16, #tpu.memory_space<vmem>>
    %40 = tpu.memref_squeeze %39 : memref<1x16x256xbf16, #tpu.memory_space<vmem>> -> memref<16x256xbf16, #tpu.memory_space<vmem>>
    %c0 = arith.constant 0 : index
    %c0_23 = arith.constant 0 : index
    %41 = vector.load %40[%c0, %c0_23] : memref<16x256xbf16, #tpu.memory_space<vmem>>, vector<16x128xbf16>
    %c0_24 = arith.constant 0 : index
    %c0_25 = arith.constant 0 : index
    %42 = vector.load %arg10[%c0_24, %c0_25] : memref<432x128xbf16, #tpu.memory_space<vmem>>, vector<16x128xbf16>
    tpu.vector_store %arg10[%c0_24, %c0_25], %41 {strides = array<i32>} : memref<432x128xbf16, #tpu.memory_space<vmem>>, vector<16x128xbf16>,
    %c0_i32_26 = arith.constant 0 : i32
    %c0_i32_27 = arith.constant 0 : i32
    %43 = tpu.memref_slice %arg9[%38, %c0_i32_26, %c0_i32_27] : memref<4x16x256xbf16, #tpu.memory_space<vmem>> -> memref<1x16x256xbf16, #tpu.memory_space<vmem>>
    %44 = tpu.memref_squeeze %43 : memref<1x16x256xbf16, #tpu.memory_space<vmem>> -> memref<16x256xbf16, #tpu.memory_space<vmem>>
    %c0_28 = arith.constant 0 : index
    %c1 = arith.constant 1 : index
    %45 = vector.load %44[%c0_28, %c1] : memref<16x256xbf16, #tpu.memory_space<vmem>>, vector<16x128xbf16>
    %c16 = arith.constant 16 : index
    %c0_29 = arith.constant 0 : index
    %46 = vector.load %arg10[%c16, %c0_29] : memref<432x128xbf16, #tpu.memory_space<vmem>>, vector<16x128xbf16>
    tpu.vector_store %arg10[%c16, %c0_29], %45 {strides = array<i32>} : memref<432x128xbf16, #tpu.memory_space<vmem>>, vector<16x128xbf16>,
    %c0_i32_30 = arith.constant 0 : i32
    %c0_i32_31 = arith.constant 0 : i32
    %47 = tpu.memref_slice %arg9[%38, %c0_i32_30, %c0_i32_31] : memref<4x16x256xbf16, #tpu.memory_space<vmem>> -> memref<1x16x256xbf16, #tpu.memory_space<vmem>>
    %48 = tpu.memref_squeeze %47 : memref<1x16x256xbf16, #tpu.memory_space<vmem>> -> memref<16x256xbf16, #tpu.memory_space<vmem>>
    %c0_32 = arith.constant 0 : index
    %c2 = arith.constant 2 : index
    %49 = vector.load %48[%c0_32, %c2] : memref<16x256xbf16, #tpu.memory_space<vmem>>, vector<16x128xbf16>
    %c32 = arith.constant 32 : index
    %c0_33 = arith.constant 0 : index
    %50 = vector.load %arg10[%c32, %c0_33] : memref<432x128xbf16, #tpu.memory_space<vmem>>, vector<16x128xbf16>
    tpu.vector_store %arg10[%c32, %c0_33], %49 {strides = array<i32>} : memref<432x128xbf16, #tpu.memory_space<vmem>>, vector<16x128xbf16>,
    %c0_i32_34 = arith.constant 0 : i32
    %c0_i32_35 = arith.constant 0 : i32
    %51 = tpu.memref_slice %arg9[%38, %c0_i32_34, %c0_i32_35] : memref<4x16x256xbf16, #tpu.memory_space<vmem>> -> memref<1x16x256xbf16, #tpu.memory_space<vmem>>
    %52 = tpu.memref_squeeze %51 : memref<1x16x256xbf16, #tpu.memory_space<vmem>> -> memref<16x256xbf16, #tpu.memory_space<vmem>>
    %c0_36 = arith.constant 0 : index
    %c10 = arith.constant 10 : index
    %53 = vector.load %52[%c0_36, %c10] : memref<16x256xbf16, #tpu.memory_space<vmem>>, vector<16x128xbf16>
    %c48 = arith.constant 48 : index
    %c0_37 = arith.constant 0 : index
    %54 = vector.load %arg10[%c48, %c0_37] : memref<432x128xbf16, #tpu.memory_space<vmem>>, vector<16x128xbf16>
    tpu.vector_store %arg10[%c48, %c0_37], %53 {strides = array<i32>} : memref<432x128xbf16, #tpu.memory_space<vmem>>, vector<16x128xbf16>,
    %c0_i32_38 = arith.constant 0 : i32
    %c0_i32_39 = arith.constant 0 : i32
    %55 = tpu.memref_slice %arg9[%38, %c0_i32_38, %c0_i32_39] : memref<4x16x256xbf16, #tpu.memory_space<vmem>> -> memref<1x16x256xbf16, #tpu.memory_space<vmem>>
    %56 = tpu.memref_squeeze %55 : memref<1x16x256xbf16, #tpu.memory_space<vmem>> -> memref<16x256xbf16, #tpu.memory_space<vmem>>
    %c0_40 = arith.constant 0 : index
    %c11 = arith.constant 11 : index
    %57 = vector.load %56[%c0_40, %c11] : memref<16x256xbf16, #tpu.memory_space<vmem>>, vector<16x128xbf16>
    %c64 = arith.constant 64 : index
    %c0_41 = arith.constant 0 : index
    %58 = vector.load %arg10[%c64, %c0_41] : memref<432x128xbf16, #tpu.memory_space<vmem>>, vector<16x128xbf16>
    tpu.vector_store %arg10[%c64, %c0_41], %57 {strides = array<i32>} : memref<432x128xbf16, #tpu.memory_space<vmem>>, vector<16x128xbf16>,
    %c0_i32_42 = arith.constant 0 : i32
    %c0_i32_43 = arith.constant 0 : i32
    %59 = tpu.memref_slice %arg9[%38, %c0_i32_42, %c0_i32_43] : memref<4x16x256xbf16, #tpu.memory_space<vmem>> -> memref<1x16x256xbf16, #tpu.memory_space<vmem>>
    %60 = tpu.memref_squeeze %59 : memref<1x16x256xbf16, #tpu.memory_space<vmem>> -> memref<16x256xbf16, #tpu.memory_space<vmem>>
    %c0_44 = arith.constant 0 : index
    %c12 = arith.constant 12 : index
    %61 = vector.load %60[%c0_44, %c12] : memref<16x256xbf16, #tpu.memory_space<vmem>>, vector<16x128xbf16>
    %c80 = arith.constant 80 : index
    %c0_45 = arith.constant 0 : index
    %62 = vector.load %arg10[%c80, %c0_45] : memref<432x128xbf16, #tpu.memory_space<vmem>>, vector<16x128xbf16>
    tpu.vector_store %arg10[%c80, %c0_45], %61 {strides = array<i32>} : memref<432x128xbf16, #tpu.memory_space<vmem>>, vector<16x128xbf16>,
    %c0_i32_46 = arith.constant 0 : i32
    %c0_i32_47 = arith.constant 0 : i32
    %63 = tpu.memref_slice %arg9[%38, %c0_i32_46, %c0_i32_47] : memref<4x16x256xbf16, #tpu.memory_space<vmem>> -> memref<1x16x256xbf16, #tpu.memory_space<vmem>>
    %64 = tpu.memref_squeeze %63 : memref<1x16x256xbf16, #tpu.memory_space<vmem>> -> memref<16x256xbf16, #tpu.memory_space<vmem>>
    %c0_48 = arith.constant 0 : index
    %c20 = arith.constant 20 : index
    %65 = vector.load %64[%c0_48, %c20] : memref<16x256xbf16, #tpu.memory_space<vmem>>, vector<16x128xbf16>
    %c96 = arith.constant 96 : index
    %c0_49 = arith.constant 0 : index
    %66 = vector.load %arg10[%c96, %c0_49] : memref<432x128xbf16, #tpu.memory_space<vmem>>, vector<16x128xbf16>
    tpu.vector_store %arg10[%c96, %c0_49], %65 {strides = array<i32>} : memref<432x128xbf16, #tpu.memory_space<vmem>>, vector<16x128xbf16>,
    %c0_i32_50 = arith.constant 0 : i32
    %c0_i32_51 = arith.constant 0 : i32
    %67 = tpu.memref_slice %arg9[%38, %c0_i32_50, %c0_i32_51] : memref<4x16x256xbf16, #tpu.memory_space<vmem>> -> memref<1x16x256xbf16, #tpu.memory_space<vmem>>
    %68 = tpu.memref_squeeze %67 : memref<1x16x256xbf16, #tpu.memory_space<vmem>> -> memref<16x256xbf16, #tpu.memory_space<vmem>>
    %c0_52 = arith.constant 0 : index
    %c21 = arith.constant 21 : index
    %69 = vector.load %68[%c0_52, %c21] : memref<16x256xbf16, #tpu.memory_space<vmem>>, vector<16x128xbf16>
    %c112 = arith.constant 112 : index
    %c0_53 = arith.constant 0 : index
    %70 = vector.load %arg10[%c112, %c0_53] : memref<432x128xbf16, #tpu.memory_space<vmem>>, vector<16x128xbf16>
    tpu.vector_store %arg10[%c112, %c0_53], %69 {strides = array<i32>} : memref<432x128xbf16, #tpu.memory_space<vmem>>, vector<16x128xbf16>,
    %c0_i32_54 = arith.constant 0 : i32
    %c0_i32_55 = arith.constant 0 : i32
    %71 = tpu.memref_slice %arg9[%38, %c0_i32_54, %c0_i32_55] : memref<4x16x256xbf16, #tpu.memory_space<vmem>> -> memref<1x16x256xbf16, #tpu.memory_space<vmem>>
    %72 = tpu.memref_squeeze %71 : memref<1x16x256xbf16, #tpu.memory_space<vmem>> -> memref<16x256xbf16, #tpu.memory_space<vmem>>
    %c0_56 = arith.constant 0 : index
    %c22 = arith.constant 22 : index
    %73 = vector.load %72[%c0_56, %c22] : memref<16x256xbf16, #tpu.memory_space<vmem>>, vector<16x128xbf16>
    %c128 = arith.constant 128 : index
    %c0_57 = arith.constant 0 : index
    %74 = vector.load %arg10[%c128, %c0_57] : memref<432x128xbf16, #tpu.memory_space<vmem>>, vector<16x128xbf16>
    tpu.vector_store %arg10[%c128, %c0_57], %73 {strides = array<i32>} : memref<432x128xbf16, #tpu.memory_space<vmem>>, vector<16x128xbf16>,
    %c1_i32_58 = arith.constant 1 : i32
    %75 = arith.addi %arg1, %c1_i32_58 : i32
    %c4_i32_59 = arith.constant 4 : i32
    %c0_i32_60 = arith.constant 0 : i32
    %76 = arith.cmpi eq, %c4_i32_59, %c0_i32_60 : i32
    %c1_i32_61 = arith.constant 1 : i32
    %77 = arith.select %76, %c1_i32_61, %c4_i32_59 : i32
    %78 = arith.remsi %75, %77 : i32
    %c0_i32_62 = arith.constant 0 : i32
    %79 = arith.cmpi ne, %78, %c0_i32_62 : i32
    %c0_i32_63 = arith.constant 0 : i32
    %80 = arith.cmpi slt, %78, %c0_i32_63 : i32
    %c0_i32_64 = arith.constant 0 : i32
    %81 = arith.cmpi slt, %77, %c0_i32_64 : i32
    %82 = arith.xori %80, %81 : i1
    %83 = arith.andi %82, %79 : i1
    %84 = arith.addi %78, %77 : i32
    %85 = arith.select %83, %84, %78 : i32
    %c0_i32_65 = arith.constant 0 : i32
    %c0_i32_66 = arith.constant 0 : i32
    %86 = tpu.memref_slice %arg9[%85, %c0_i32_65, %c0_i32_66] : memref<4x16x256xbf16, #tpu.memory_space<vmem>> -> memref<1x16x256xbf16, #tpu.memory_space<vmem>>
    %87 = tpu.memref_squeeze %86 : memref<1x16x256xbf16, #tpu.memory_space<vmem>> -> memref<16x256xbf16, #tpu.memory_space<vmem>>
    %c0_67 = arith.constant 0 : index
    %c0_68 = arith.constant 0 : index
    %88 = vector.load %87[%c0_67, %c0_68] : memref<16x256xbf16, #tpu.memory_space<vmem>>, vector<16x128xbf16>
    %c144 = arith.constant 144 : index
    %c0_69 = arith.constant 0 : index
    %89 = vector.load %arg10[%c144, %c0_69] : memref<432x128xbf16, #tpu.memory_space<vmem>>, vector<16x128xbf16>
    tpu.vector_store %arg10[%c144, %c0_69], %88 {strides = array<i32>} : memref<432x128xbf16, #tpu.memory_space<vmem>>, vector<16x128xbf16>,
    %c0_i32_70 = arith.constant 0 : i32
    %c0_i32_71 = arith.constant 0 : i32
    %90 = tpu.memref_slice %arg9[%85, %c0_i32_70, %c0_i32_71] : memref<4x16x256xbf16, #tpu.memory_space<vmem>> -> memref<1x16x256xbf16, #tpu.memory_space<vmem>>
    %91 = tpu.memref_squeeze %90 : memref<1x16x256xbf16, #tpu.memory_space<vmem>> -> memref<16x256xbf16, #tpu.memory_space<vmem>>
    %c0_72 = arith.constant 0 : index
    %c1_73 = arith.constant 1 : index
    %92 = vector.load %91[%c0_72, %c1_73] : memref<16x256xbf16, #tpu.memory_space<vmem>>, vector<16x128xbf16>
    %c160 = arith.constant 160 : index
    %c0_74 = arith.constant 0 : index
    %93 = vector.load %arg10[%c160, %c0_74] : memref<432x128xbf16, #tpu.memory_space<vmem>>, vector<16x128xbf16>
    tpu.vector_store %arg10[%c160, %c0_74], %92 {strides = array<i32>} : memref<432x128xbf16, #tpu.memory_space<vmem>>, vector<16x128xbf16>,
    %c0_i32_75 = arith.constant 0 : i32
    %c0_i32_76 = arith.constant 0 : i32
    %94 = tpu.memref_slice %arg9[%85, %c0_i32_75, %c0_i32_76] : memref<4x16x256xbf16, #tpu.memory_space<vmem>> -> memref<1x16x256xbf16, #tpu.memory_space<vmem>>
    %95 = tpu.memref_squeeze %94 : memref<1x16x256xbf16, #tpu.memory_space<vmem>> -> memref<16x256xbf16, #tpu.memory_space<vmem>>
    %c0_77 = arith.constant 0 : index
    %c2_78 = arith.constant 2 : index
    %96 = vector.load %95[%c0_77, %c2_78] : memref<16x256xbf16, #tpu.memory_space<vmem>>, vector<16x128xbf16>
    %c176 = arith.constant 176 : index
    %c0_79 = arith.constant 0 : index
    %97 = vector.load %arg10[%c176, %c0_79] : memref<432x128xbf16, #tpu.memory_space<vmem>>, vector<16x128xbf16>
    tpu.vector_store %arg10[%c176, %c0_79], %96 {strides = array<i32>} : memref<432x128xbf16, #tpu.memory_space<vmem>>, vector<16x128xbf16>,
    %c0_i32_80 = arith.constant 0 : i32
    %c0_i32_81 = arith.constant 0 : i32
    %98 = tpu.memref_slice %arg9[%85, %c0_i32_80, %c0_i32_81] : memref<4x16x256xbf16, #tpu.memory_space<vmem>> -> memref<1x16x256xbf16, #tpu.memory_space<vmem>>
    %99 = tpu.memref_squeeze %98 : memref<1x16x256xbf16, #tpu.memory_space<vmem>> -> memref<16x256xbf16, #tpu.memory_space<vmem>>
    %c0_82 = arith.constant 0 : index
    %c10_83 = arith.constant 10 : index
    %100 = vector.load %99[%c0_82, %c10_83] : memref<16x256xbf16, #tpu.memory_space<vmem>>, vector<16x128xbf16>
    %c192 = arith.constant 192 : index
    %c0_84 = arith.constant 0 : index
    %101 = vector.load %arg10[%c192, %c0_84] : memref<432x128xbf16, #tpu.memory_space<vmem>>, vector<16x128xbf16>
    tpu.vector_store %arg10[%c192, %c0_84], %100 {strides = array<i32>} : memref<432x128xbf16, #tpu.memory_space<vmem>>, vector<16x128xbf16>,
    %c0_i32_85 = arith.constant 0 : i32
    %c0_i32_86 = arith.constant 0 : i32
    %102 = tpu.memref_slice %arg9[%85, %c0_i32_85, %c0_i32_86] : memref<4x16x256xbf16, #tpu.memory_space<vmem>> -> memref<1x16x256xbf16, #tpu.memory_space<vmem>>
    %103 = tpu.memref_squeeze %102 : memref<1x16x256xbf16, #tpu.memory_space<vmem>> -> memref<16x256xbf16, #tpu.memory_space<vmem>>
    %c0_87 = arith.constant 0 : index
    %c11_88 = arith.constant 11 : index
    %104 = vector.load %103[%c0_87, %c11_88] : memref<16x256xbf16, #tpu.memory_space<vmem>>, vector<16x128xbf16>
    %c208 = arith.constant 208 : index
    %c0_89 = arith.constant 0 : index
    %105 = vector.load %arg10[%c208, %c0_89] : memref<432x128xbf16, #tpu.memory_space<vmem>>, vector<16x128xbf16>
    tpu.vector_store %arg10[%c208, %c0_89], %104 {strides = array<i32>} : memref<432x128xbf16, #tpu.memory_space<vmem>>, vector<16x128xbf16>,
    %c0_i32_90 = arith.constant 0 : i32
    %c0_i32_91 = arith.constant 0 : i32
    %106 = tpu.memref_slice %arg9[%85, %c0_i32_90, %c0_i32_91] : memref<4x16x256xbf16, #tpu.memory_space<vmem>> -> memref<1x16x256xbf16, #tpu.memory_space<vmem>>
    %107 = tpu.memref_squeeze %106 : memref<1x16x256xbf16, #tpu.memory_space<vmem>> -> memref<16x256xbf16, #tpu.memory_space<vmem>>
    %c0_92 = arith.constant 0 : index
    %c12_93 = arith.constant 12 : index
    %108 = vector.load %107[%c0_92, %c12_93] : memref<16x256xbf16, #tpu.memory_space<vmem>>, vector<16x128xbf16>
    %c224 = arith.constant 224 : index
    %c0_94 = arith.constant 0 : index
    %109 = vector.load %arg10[%c224, %c0_94] : memref<432x128xbf16, #tpu.memory_space<vmem>>, vector<16x128xbf16>
    tpu.vector_store %arg10[%c224, %c0_94], %108 {strides = array<i32>} : memref<432x128xbf16, #tpu.memory_space<vmem>>, vector<16x128xbf16>,
    %c0_i32_95 = arith.constant 0 : i32
    %c0_i32_96 = arith.constant 0 : i32
    %110 = tpu.memref_slice %arg9[%85, %c0_i32_95, %c0_i32_96] : memref<4x16x256xbf16, #tpu.memory_space<vmem>> -> memref<1x16x256xbf16, #tpu.memory_space<vmem>>
    %111 = tpu.memref_squeeze %110 : memref<1x16x256xbf16, #tpu.memory_space<vmem>> -> memref<16x256xbf16, #tpu.memory_space<vmem>>
    %c0_97 = arith.constant 0 : index
    %c20_98 = arith.constant 20 : index
    %112 = vector.load %111[%c0_97, %c20_98] : memref<16x256xbf16, #tpu.memory_space<vmem>>, vector<16x128xbf16>
    %c240 = arith.constant 240 : index
    %c0_99 = arith.constant 0 : index
    %113 = vector.load %arg10[%c240, %c0_99] : memref<432x128xbf16, #tpu.memory_space<vmem>>, vector<16x128xbf16>
    tpu.vector_store %arg10[%c240, %c0_99], %112 {strides = array<i32>} : memref<432x128xbf16, #tpu.memory_space<vmem>>, vector<16x128xbf16>,
    %c0_i32_100 = arith.constant 0 : i32
    %c0_i32_101 = arith.constant 0 : i32
    %114 = tpu.memref_slice %arg9[%85, %c0_i32_100, %c0_i32_101] : memref<4x16x256xbf16, #tpu.memory_space<vmem>> -> memref<1x16x256xbf16, #tpu.memory_space<vmem>>
    %115 = tpu.memref_squeeze %114 : memref<1x16x256xbf16, #tpu.memory_space<vmem>> -> memref<16x256xbf16, #tpu.memory_space<vmem>>
    %c0_102 = arith.constant 0 : index
    %c21_103 = arith.constant 21 : index
    %116 = vector.load %115[%c0_102, %c21_103] : memref<16x256xbf16, #tpu.memory_space<vmem>>, vector<16x128xbf16>
    %c256 = arith.constant 256 : index
    %c0_104 = arith.constant 0 : index
    %117 = vector.load %arg10[%c256, %c0_104] : memref<432x128xbf16, #tpu.memory_space<vmem>>, vector<16x128xbf16>
    tpu.vector_store %arg10[%c256, %c0_104], %116 {strides = array<i32>} : memref<432x128xbf16, #tpu.memory_space<vmem>>, vector<16x128xbf16>,
    %c0_i32_105 = arith.constant 0 : i32
    %c0_i32_106 = arith.constant 0 : i32
    %118 = tpu.memref_slice %arg9[%85, %c0_i32_105, %c0_i32_106] : memref<4x16x256xbf16, #tpu.memory_space<vmem>> -> memref<1x16x256xbf16, #tpu.memory_space<vmem>>
    %119 = tpu.memref_squeeze %118 : memref<1x16x256xbf16, #tpu.memory_space<vmem>> -> memref<16x256xbf16, #tpu.memory_space<vmem>>
    %c0_107 = arith.constant 0 : index
    %c22_108 = arith.constant 22 : index
    %120 = vector.load %119[%c0_107, %c22_108] : memref<16x256xbf16, #tpu.memory_space<vmem>>, vector<16x128xbf16>
    %c272 = arith.constant 272 : index
    %c0_109 = arith.constant 0 : index
    %121 = vector.load %arg10[%c272, %c0_109] : memref<432x128xbf16, #tpu.memory_space<vmem>>, vector<16x128xbf16>
    tpu.vector_store %arg10[%c272, %c0_109], %120 {strides = array<i32>} : memref<432x128xbf16, #tpu.memory_space<vmem>>, vector<16x128xbf16>,
    %c2_i32_110 = arith.constant 2 : i32
    %122 = arith.addi %arg1, %c2_i32_110 : i32
    %c4_i32_111 = arith.constant 4 : i32
    %c0_i32_112 = arith.constant 0 : i32
    %123 = arith.cmpi eq, %c4_i32_111, %c0_i32_112 : i32
    %c1_i32_113 = arith.constant 1 : i32
    %124 = arith.select %123, %c1_i32_113, %c4_i32_111 : i32
    %125 = arith.remsi %122, %124 : i32
    %c0_i32_114 = arith.constant 0 : i32
    %126 = arith.cmpi ne, %125, %c0_i32_114 : i32
    %c0_i32_115 = arith.constant 0 : i32
    %127 = arith.cmpi slt, %125, %c0_i32_115 : i32
    %c0_i32_116 = arith.constant 0 : i32
    %128 = arith.cmpi slt, %124, %c0_i32_116 : i32
    %129 = arith.xori %127, %128 : i1
    %130 = arith.andi %129, %126 : i1
    %131 = arith.addi %125, %124 : i32
    %132 = arith.select %130, %131, %125 : i32
    %c0_i32_117 = arith.constant 0 : i32
    %c0_i32_118 = arith.constant 0 : i32
    %133 = tpu.memref_slice %arg9[%132, %c0_i32_117, %c0_i32_118] : memref<4x16x256xbf16, #tpu.memory_space<vmem>> -> memref<1x16x256xbf16, #tpu.memory_space<vmem>>
    %134 = tpu.memref_squeeze %133 : memref<1x16x256xbf16, #tpu.memory_space<vmem>> -> memref<16x256xbf16, #tpu.memory_space<vmem>>
    %c0_119 = arith.constant 0 : index
    %c0_120 = arith.constant 0 : index
    %135 = vector.load %134[%c0_119, %c0_120] : memref<16x256xbf16, #tpu.memory_space<vmem>>, vector<16x128xbf16>
    %c288 = arith.constant 288 : index
    %c0_121 = arith.constant 0 : index
    %136 = vector.load %arg10[%c288, %c0_121] : memref<432x128xbf16, #tpu.memory_space<vmem>>, vector<16x128xbf16>
    tpu.vector_store %arg10[%c288, %c0_121], %135 {strides = array<i32>} : memref<432x128xbf16, #tpu.memory_space<vmem>>, vector<16x128xbf16>,
    %c0_i32_122 = arith.constant 0 : i32
    %c0_i32_123 = arith.constant 0 : i32
    %137 = tpu.memref_slice %arg9[%132, %c0_i32_122, %c0_i32_123] : memref<4x16x256xbf16, #tpu.memory_space<vmem>> -> memref<1x16x256xbf16, #tpu.memory_space<vmem>>
    %138 = tpu.memref_squeeze %137 : memref<1x16x256xbf16, #tpu.memory_space<vmem>> -> memref<16x256xbf16, #tpu.memory_space<vmem>>
    %c0_124 = arith.constant 0 : index
    %c1_125 = arith.constant 1 : index
    %139 = vector.load %138[%c0_124, %c1_125] : memref<16x256xbf16, #tpu.memory_space<vmem>>, vector<16x128xbf16>
    %c304 = arith.constant 304 : index
    %c0_126 = arith.constant 0 : index
    %140 = vector.load %arg10[%c304, %c0_126] : memref<432x128xbf16, #tpu.memory_space<vmem>>, vector<16x128xbf16>
    tpu.vector_store %arg10[%c304, %c0_126], %139 {strides = array<i32>} : memref<432x128xbf16, #tpu.memory_space<vmem>>, vector<16x128xbf16>,
    %c0_i32_127 = arith.constant 0 : i32
    %c0_i32_128 = arith.constant 0 : i32
    %141 = tpu.memref_slice %arg9[%132, %c0_i32_127, %c0_i32_128] : memref<4x16x256xbf16, #tpu.memory_space<vmem>> -> memref<1x16x256xbf16, #tpu.memory_space<vmem>>
    %142 = tpu.memref_squeeze %141 : memref<1x16x256xbf16, #tpu.memory_space<vmem>> -> memref<16x256xbf16, #tpu.memory_space<vmem>>
    %c0_129 = arith.constant 0 : index
    %c2_130 = arith.constant 2 : index
    %143 = vector.load %142[%c0_129, %c2_130] : memref<16x256xbf16, #tpu.memory_space<vmem>>, vector<16x128xbf16>
    %c320 = arith.constant 320 : index
    %c0_131 = arith.constant 0 : index
    %144 = vector.load %arg10[%c320, %c0_131] : memref<432x128xbf16, #tpu.memory_space<vmem>>, vector<16x128xbf16>
    tpu.vector_store %arg10[%c320, %c0_131], %143 {strides = array<i32>} : memref<432x128xbf16, #tpu.memory_space<vmem>>, vector<16x128xbf16>,
    %c0_i32_132 = arith.constant 0 : i32
    %c0_i32_133 = arith.constant 0 : i32
    %145 = tpu.memref_slice %arg9[%132, %c0_i32_132, %c0_i32_133] : memref<4x16x256xbf16, #tpu.memory_space<vmem>> -> memref<1x16x256xbf16, #tpu.memory_space<vmem>>
    %146 = tpu.memref_squeeze %145 : memref<1x16x256xbf16, #tpu.memory_space<vmem>> -> memref<16x256xbf16, #tpu.memory_space<vmem>>
    %c0_134 = arith.constant 0 : index
    %c10_135 = arith.constant 10 : index
    %147 = vector.load %146[%c0_134, %c10_135] : memref<16x256xbf16, #tpu.memory_space<vmem>>, vector<16x128xbf16>
    %c336 = arith.constant 336 : index
    %c0_136 = arith.constant 0 : index
    %148 = vector.load %arg10[%c336, %c0_136] : memref<432x128xbf16, #tpu.memory_space<vmem>>, vector<16x128xbf16>
    tpu.vector_store %arg10[%c336, %c0_136], %147 {strides = array<i32>} : memref<432x128xbf16, #tpu.memory_space<vmem>>, vector<16x128xbf16>,
    %c0_i32_137 = arith.constant 0 : i32
    %c0_i32_138 = arith.constant 0 : i32
    %149 = tpu.memref_slice %arg9[%132, %c0_i32_137, %c0_i32_138] : memref<4x16x256xbf16, #tpu.memory_space<vmem>> -> memref<1x16x256xbf16, #tpu.memory_space<vmem>>
    %150 = tpu.memref_squeeze %149 : memref<1x16x256xbf16, #tpu.memory_space<vmem>> -> memref<16x256xbf16, #tpu.memory_space<vmem>>
    %c0_139 = arith.constant 0 : index
    %c11_140 = arith.constant 11 : index
    %151 = vector.load %150[%c0_139, %c11_140] : memref<16x256xbf16, #tpu.memory_space<vmem>>, vector<16x128xbf16>
    %c352 = arith.constant 352 : index
    %c0_141 = arith.constant 0 : index
    %152 = vector.load %arg10[%c352, %c0_141] : memref<432x128xbf16, #tpu.memory_space<vmem>>, vector<16x128xbf16>
    tpu.vector_store %arg10[%c352, %c0_141], %151 {strides = array<i32>} : memref<432x128xbf16, #tpu.memory_space<vmem>>, vector<16x128xbf16>,
    %c0_i32_142 = arith.constant 0 : i32
    %c0_i32_143 = arith.constant 0 : i32
    %153 = tpu.memref_slice %arg9[%132, %c0_i32_142, %c0_i32_143] : memref<4x16x256xbf16, #tpu.memory_space<vmem>> -> memref<1x16x256xbf16, #tpu.memory_space<vmem>>
    %154 = tpu.memref_squeeze %153 : memref<1x16x256xbf16, #tpu.memory_space<vmem>> -> memref<16x256xbf16, #tpu.memory_space<vmem>>
    %c0_144 = arith.constant 0 : index
    %c12_145 = arith.constant 12 : index
    %155 = vector.load %154[%c0_144, %c12_145] : memref<16x256xbf16, #tpu.memory_space<vmem>>, vector<16x128xbf16>
    %c368 = arith.constant 368 : index
    %c0_146 = arith.constant 0 : index
    %156 = vector.load %arg10[%c368, %c0_146] : memref<432x128xbf16, #tpu.memory_space<vmem>>, vector<16x128xbf16>
    tpu.vector_store %arg10[%c368, %c0_146], %155 {strides = array<i32>} : memref<432x128xbf16, #tpu.memory_space<vmem>>, vector<16x128xbf16>,
    %c0_i32_147 = arith.constant 0 : i32
    %c0_i32_148 = arith.constant 0 : i32
    %157 = tpu.memref_slice %arg9[%132, %c0_i32_147, %c0_i32_148] : memref<4x16x256xbf16, #tpu.memory_space<vmem>> -> memref<1x16x256xbf16, #tpu.memory_space<vmem>>
    %158 = tpu.memref_squeeze %157 : memref<1x16x256xbf16, #tpu.memory_space<vmem>> -> memref<16x256xbf16, #tpu.memory_space<vmem>>
    %c0_149 = arith.constant 0 : index
    %c20_150 = arith.constant 20 : index
    %159 = vector.load %158[%c0_149, %c20_150] : memref<16x256xbf16, #tpu.memory_space<vmem>>, vector<16x128xbf16>
    %c384 = arith.constant 384 : index
    %c0_151 = arith.constant 0 : index
    %160 = vector.load %arg10[%c384, %c0_151] : memref<432x128xbf16, #tpu.memory_space<vmem>>, vector<16x128xbf16>
    tpu.vector_store %arg10[%c384, %c0_151], %159 {strides = array<i32>} : memref<432x128xbf16, #tpu.memory_space<vmem>>, vector<16x128xbf16>,
    %c0_i32_152 = arith.constant 0 : i32
    %c0_i32_153 = arith.constant 0 : i32
    %161 = tpu.memref_slice %arg9[%132, %c0_i32_152, %c0_i32_153] : memref<4x16x256xbf16, #tpu.memory_space<vmem>> -> memref<1x16x256xbf16, #tpu.memory_space<vmem>>
    %162 = tpu.memref_squeeze %161 : memref<1x16x256xbf16, #tpu.memory_space<vmem>> -> memref<16x256xbf16, #tpu.memory_space<vmem>>
    %c0_154 = arith.constant 0 : index
    %c21_155 = arith.constant 21 : index
    %163 = vector.load %162[%c0_154, %c21_155] : memref<16x256xbf16, #tpu.memory_space<vmem>>, vector<16x128xbf16>
    %c400 = arith.constant 400 : index
    %c0_156 = arith.constant 0 : index
    %164 = vector.load %arg10[%c400, %c0_156] : memref<432x128xbf16, #tpu.memory_space<vmem>>, vector<16x128xbf16>
    tpu.vector_store %arg10[%c400, %c0_156], %163 {strides = array<i32>} : memref<432x128xbf16, #tpu.memory_space<vmem>>, vector<16x128xbf16>,
    %c0_i32_157 = arith.constant 0 : i32
    %c0_i32_158 = arith.constant 0 : i32
    %165 = tpu.memref_slice %arg9[%132, %c0_i32_157, %c0_i32_158] : memref<4x16x256xbf16, #tpu.memory_space<vmem>> -> memref<1x16x256xbf16, #tpu.memory_space<vmem>>
    %166 = tpu.memref_squeeze %165 : memref<1x16x256xbf16, #tpu.memory_space<vmem>> -> memref<16x256xbf16, #tpu.memory_space<vmem>>
    %c0_159 = arith.constant 0 : index
    %c22_160 = arith.constant 22 : index
    %167 = vector.load %166[%c0_159, %c22_160] : memref<16x256xbf16, #tpu.memory_space<vmem>>, vector<16x128xbf16>
    %c416 = arith.constant 416 : index
    %c0_161 = arith.constant 0 : index
    %168 = vector.load %arg10[%c416, %c0_161] : memref<432x128xbf16, #tpu.memory_space<vmem>>, vector<16x128xbf16>
    tpu.vector_store %arg10[%c416, %c0_161], %167 {strides = array<i32>} : memref<432x128xbf16, #tpu.memory_space<vmem>>, vector<16x128xbf16>,
    %c0_162 = arith.constant 0 : index
    %c0_163 = arith.constant 0 : index
    %169 = vector.load %arg4[%c0_162, %c0_163] : memref<16x432xbf16, #tpu.memory_space<vmem>>, vector<16x432xbf16>
    %c0_164 = arith.constant 0 : index
    %c0_165 = arith.constant 0 : index
    %170 = vector.load %arg10[%c0_164, %c0_165] : memref<432x128xbf16, #tpu.memory_space<vmem>>, vector<432x128xbf16>
    %cst = arith.constant dense<0.000000e+00> : vector<16x128xf32>
    %171 = tpu.matmul %169, %170, %cst {dimension_numbers = #tpu.dot_dimension_numbers<[1], [0], [0], [1], [0, 0, 1, 1], [], []>} : vector<16x432xbf16>, vector<432x128xbf16>, vector<16x128xf32> -> vector<16x128xf32>
    %c0_166 = arith.constant 0 : index
    %c0_167 = arith.constant 0 : index
    %172 = vector.load %arg5[%c0_166, %c0_167] : memref<16x1xf32, #tpu.memory_space<vmem>>, vector<16x1xf32>
    %173 = vector.broadcast %172 : vector<16x1xf32> to vector<16x128xf32>
    %174 = arith.addf %171, %173 : vector<16x128xf32>
    %cst_168 = arith.constant 0.000000e+00 : f32
    %175 = vector.broadcast %cst_168 : f32 to vector<16x128xf32>
    %176 = arith.maximumf %174, %175 : vector<16x128xf32>
    %177 = arith.truncf %176 : vector<16x128xf32> to vector<16x128xbf16>
    %c0_169 = arith.constant 0 : index
    %c0_170 = arith.constant 0 : index
    %c0_171 = arith.constant 0 : index
    %c0_172 = arith.constant 0 : index
    %178 = vector.load %arg3[%c0_169, %c0_170, %c0_171, %c0_172] : memref<1x1x16x128xbf16, #tpu.memory_space<vmem>>, vector<1x1x16x128xbf16>
    %179 = vector.shape_cast %178 : vector<1x1x16x128xbf16> to vector<16x128xbf16>
    %cst_173 = arith.constant 0.000000e+00 : bf16
    %180 = vector.broadcast %cst_173 : bf16 to vector<16x128xbf16>
    %181 = arith.maximumf %179, %180 : vector<16x128xbf16>
    %182 = tpu.concatenate %181, %177 in 0 : vector<16x128xbf16>, vector<16x128xbf16> -> vector<32x128xbf16>
    %c0_174 = arith.constant 0 : index
    %c0_175 = arith.constant 0 : index
    %183 = vector.load %arg6[%c0_174, %c0_175] : memref<8x32xbf16, #tpu.memory_space<vmem>>, vector<8x32xbf16>
    %cst_176 = arith.constant dense<0.000000e+00> : vector<8x128xf32>
    %184 = tpu.matmul %183, %182, %cst_176 {dimension_numbers = #tpu.dot_dimension_numbers<[1], [0], [0], [1], [0, 0, 1, 1], [], []>} : vector<8x32xbf16>, vector<32x128xbf16>, vector<8x128xf32> -> vector<8x128xf32>
    %c0_177 = arith.constant 0 : index
    %c0_178 = arith.constant 0 : index
    %185 = vector.load %arg7[%c0_177, %c0_178] : memref<8x1xf32, #tpu.memory_space<vmem>>, vector<8x1xf32>
    %186 = vector.broadcast %185 : vector<8x1xf32> to vector<8x128xf32>
    %187 = arith.addf %184, %186 : vector<8x128xf32>
    %cst_179 = arith.constant 0.000000e+00 : f32
    %188 = vector.broadcast %cst_179 : f32 to vector<8x128xf32>
    %189 = arith.maximumf %187, %188 : vector<8x128xf32>
    %190 = arith.truncf %189 : vector<8x128xf32> to vector<8x128xbf16>
    %c0_180 = arith.constant 0 : index
    %c0_181 = arith.constant 0 : index
    %c0_182 = arith.constant 0 : index
    %191 = vector.load %arg8[%c0_180, %c0_181, %c0_182] : memref<1x8x128xbf16, #tpu.memory_space<vmem>>, vector<1x8x128xbf16>
    %192 = vector.shape_cast %191 : vector<1x8x128xbf16> to vector<8x128xbf16>
    %193 = vector.shape_cast %190 : vector<8x128xbf16> to vector<1x8x128xbf16>
    tpu.vector_store %arg8[%c0_180, %c0_181, %c0_182], %193 {strides = array<i32>} : memref<1x8x128xbf16, #tpu.memory_space<vmem>>, vector<1x8x128xbf16>,
    return
  }
  func.func @transform_1(%arg0: i32, %arg1: i32) -> (i32, i32, i32, i32) {
    %c0_i32 = arith.constant 0 : i32
    %c0_i32_0 = arith.constant 0 : i32
    %c0_i32_1 = arith.constant 0 : i32
    return %arg0, %arg1, %c0_i32, %c0_i32_0 : i32, i32, i32, i32
  }
  func.func @transform_2(%arg0: i32, %arg1: i32) -> (i32, i32) {
    %c0_i32 = arith.constant 0 : i32
    %c0_i32_0 = arith.constant 0 : i32
    %c0_i32_1 = arith.constant 0 : i32
    return %c0_i32, %c0_i32_0 : i32, i32
  }
  func.func @transform_3(%arg0: i32, %arg1: i32) -> (i32, i32) {
    %c0_i32 = arith.constant 0 : i32
    %c0_i32_0 = arith.constant 0 : i32
    %c0_i32_1 = arith.constant 0 : i32
    return %c0_i32, %c0_i32_0 : i32, i32
  }
  func.func @transform_4(%arg0: i32, %arg1: i32) -> (i32, i32) {
    %c0_i32 = arith.constant 0 : i32
    %c0_i32_0 = arith.constant 0 : i32
    %c0_i32_1 = arith.constant 0 : i32
    return %c0_i32, %c0_i32_0 : i32, i32
  }
  func.func @transform_5(%arg0: i32, %arg1: i32) -> (i32, i32) {
    %c0_i32 = arith.constant 0 : i32
    %c0_i32_0 = arith.constant 0 : i32
    %c0_i32_1 = arith.constant 0 : i32
    return %c0_i32, %c0_i32_0 : i32, i32
  }
  func.func @transform_6(%arg0: i32, %arg1: i32) -> (i32, i32, i32) {
    %c0_i32 = arith.constant 0 : i32
    %c0_i32_0 = arith.constant 0 : i32
    return %arg0, %c0_i32, %arg1 : i32, i32, i32
  }
}

</mosaic_0001>

<llo_original>
// kernel: tpu_custom_call.1
$region0: #{tpu_custom_call.1}
  #allocation0 [shape = 'u32[]', space=smem, size = 0x4, offset = 0x4, fixed_abs, tag = 'smem constant byte address 0x4 - core index']
  #allocation1 [shape = 'u32[144,128]{1,0:T(1,128)}', space=vmem, size = 0x12000, scoped, tag = 'internal scratch']
  #allocation2 [shape = 'bf16[4,16,256]{2,1,0:T(8,128)(2,1)}', space=vmem, size = 0x8000, scoped, tag = 'scratch operand']
  #allocation3 [shape = 'bf16[432,128]{1,0:T(8,128)(2,1)}', space=vmem, size = 0x1b000, scoped, tag = 'scratch operand']
  #allocation4 [shape = 's32[4]{0}', space=sflag, size = 0x10, scoped, tag = 'scratch operand']
  #allocation11 [shape = 's32[]', space=sflag, size = 0x4, offset = 0, fixed_abs, tag = 'sflag constant byte address 0x0 - dummy sync flag']
  #allocation12 [shape = 's32[]', space=sflag, size = 0x4, offset = 0, fixed_abs, tag = 'sflag constant byte address 0x0 - dummy sync flag']
  #allocation13 [shape = 'u32[]', space=smem, size = 0x4, offset = 0x44, fixed_abs, tag = 'smem constant byte address 0x44 - assertion arg 0']
  #allocation14 [shape = 'u32[]', space=smem, size = 0x4, offset = 0x48, fixed_abs, tag = 'smem constant byte address 0x48 - assertion arg 1']
  #allocation15 [shape = 's32[]', space=sflag, size = 0x4, offset = 0, fixed_abs, tag = 'sflag constant byte address 0x0 - dummy sync flag']
  #allocation16 [shape = 's32[]', space=sflag, size = 0x4, offset = 0, fixed_abs, tag = 'sflag constant byte address 0x0 - dummy sync flag']
  #allocation17 [shape = 's32[]', space=sflag, size = 0x4, offset = 0, fixed_abs, tag = 'sflag constant byte address 0x0 - dummy sync flag']
  #allocation18 [shape = 's32[]', space=sflag, size = 0x4, offset = 0, fixed_abs, tag = 'sflag constant byte address 0x0 - dummy sync flag']
  #allocation19 [shape = 's32[]', space=sflag, size = 0x4, offset = 0, fixed_abs, tag = 'sflag constant byte address 0x0 - dummy sync flag']
  #allocation20 [shape = 's32[]', space=sflag, size = 0x4, offset = 0, fixed_abs, tag = 'sflag constant byte address 0x0 - dummy sync flag']
  %s0 = inlined_call_operand.hbm [shape: bf16[2,10,16,256], index: 0, kind: input, shape index: {}]
  %s1 = inlined_call_operand.hbm [shape: bf16[2,8,16,128], index: 1, kind: input, shape index: {}]
  %s2 = inlined_call_operand.hbm [shape: bf16[16,432], index: 2, kind: input, shape index: {}]
  %s3 = inlined_call_operand.vmem [shape: f32[16,1], index: 3, kind: input, shape index: {}]
  %s4 = inlined_call_operand.vmem [shape: bf16[8,32], index: 4, kind: input, shape index: {}]
  %s5 = inlined_call_operand.vmem [shape: f32[8,1], index: 5, kind: input, shape index: {}]
  %s6 = inlined_call_operand.hbm [shape: bf16[2,8,1024], index: 6, kind: output, shape index: {}]
  %s7 = sld [smem:[#allocation0]]
  $region89: #{tpu_custom_call.1} parent=0
    _
  %s9 = ssub.s32 1, %s7
  %s10 = scalar_select 0, %s9, %s7
  $region1: #{tpu_custom_call.1} parent=0
    #allocation5 [shape = 'u8[8192]{0}', space=vmem, size = 0x2000, scoped, tag = 'input window, operand 1']
    #allocation6 [shape = 's32[2]{0}', space=sflag, size = 0x8, scoped, tag = 'scoped memory for tpu_custom_call.1']
    #allocation7 [shape = 's32[2]{0}', space=sflag, size = 0x8, scoped, tag = 'scoped memory for tpu_custom_call.1']
    #allocation8 [shape = 'u8[16384]{0}', space=vmem, size = 0x4000, scoped, tag = 'input window, operand 2, single buffered']
    #allocation9 [shape = 's32[1]{0}', space=sflag, size = 0x4, scoped, tag = 'scoped memory for tpu_custom_call.1']
    #allocation10 [shape = 'u8[4096]{0}', space=vmem, size = 0x1000, scoped, tag = 'output window, operand 0']
    %11 = vsyncpa [#allocation6], 0
    %s12 = scalar_lea.sflag [#allocation6], 1
    %13 = vsyncpa %s12, 0
    %14 = vsyncpa [#allocation9], 0
    %15 = vsyncpa [#allocation7], 0
    %s16 = scalar_lea.sflag [#allocation7], 1
    %17 = vsyncpa %s16, 0
    loop: start=0, step=1, limit=18
    $region2: #{tpu_custom_call.1} parent=1 // loop_pre_header
      _
    $region3: #{tpu_custom_call.1} parent=1 // loop_header
      %s19 = sphi 0, %s23
      %p20 = scmp.ge.s32.totalorder %s19, 18
      %s26 = sphi 0, %s38
      %s27 = sphi 0, %s34
      %s28 = sphi 0, %s26
      %s29 = sphi 0, %s27
      %s30 = sphi 0, %s28
      %s31 = sphi 0, %s29
      %s43 = sphi 0, %s45
      %s46 = sphi 0, %s43
      %s47 = sphi 0, %s46
      %s63 = sphi 0, %s47
      %s67 = sphi 0, %s67
      %s69 = sphi 0, %s67
      %s70 = sphi 0, %s69
      %s84 = sphi 0, %s70
      %s88 = sphi 0, %s88
      %s90 = sphi 0, %s88
      %s91 = sphi 0, %s90
      %s105 = sphi 0, %s91
      %s109 = sphi 0, %s109
      %s111 = sphi 0, %s109
      %s112 = sphi 0, %s111
      %s126 = sphi 0, %s112
      %s130 = sphi 0, %s130
      %s132 = sphi 0, %s130
      %s133 = sphi 0, %s132
      %s147 = sphi 0, %s133
      %s155 = sphi 0, %s157
      %s158 = sphi 0, %s155
      %s159 = sphi 0, %s158
      %s175 = sphi 0, %s159
    $region4: #{tpu_custom_call.1} parent=1 // loop_header_branch
      %22 = sbr.rel (%p20) target = $region8
    $region5: #{tpu_custom_call.1} parent=1 // loop_body
      %s24 = ssub.s32 %s19, 1
      %s25 = ssub.s32 %s19, 2
      %s32 = sadd.s32 1, %s27
      %p33 = scmp.ge.s32.totalorder %s32, 8
      %s34 = scalar_select %p33, 0, %s32
      %s35 = sadd.s32 1, %s26
      %s36 = scalar_select %p33, %s35, %s26
      %p37 = scmp.ge.s32.totalorder %s36, 2
      %s38 = scalar_select %p37, 0, %s36
      %s39 = ssub.s32 %s26, %s38
      %s40 = ssub.s32 %s27, %s34
      %s41 = sor.u32 %s39, %s40
      %p42 = scmp.eq.s32.totalorder %s41, 0
      %s44 = sadd.s32 %s43, 1
      %s45 = scalar_select %p42, %s43, %s44
      %p48 = pneg %p42
      %p49 = scmp.eq.s32.totalorder %s19, 15
      %p50 = por %p48, %p49
      %p51 = scmp.ne.s32.totalorder %s43, %s46
      %p52 = scmp.eq.s32.totalorder %s19, 0
      %p53 = por %p51, %p52
      %p54 = scmp.ne.s32.totalorder %s43, %s46
      %p55 = scmp.eq.s32.totalorder %s24, 15
      %p56 = por %p54, %p55
      %p57 = scmp.ne.s32.totalorder %s46, %s47
      %p58 = scmp.eq.s32.totalorder %s24, 0
      %p59 = por %p57, %p58
      %p60 = scmp.ne.s32.totalorder %s46, %s47
      %p61 = scmp.eq.s32.totalorder %s25, 15
      %p62 = por %p60, %p61
      %p64 = scmp.ne.s32.totalorder %s47, %s63
      %p65 = scmp.eq.s32.totalorder %s25, 0
      %p66 = por %p64, %p65
      %s68 = sadd.s32 %s67, 1
      %p71 = scmp.eq.s32.totalorder %s19, 15
      %p72 = scmp.ne.s32.totalorder %s67, %s69
      %p73 = scmp.eq.s32.totalorder %s19, 0
      %p74 = por %p72, %p73
      %p75 = scmp.ne.s32.totalorder %s67, %s69
      %p76 = scmp.eq.s32.totalorder %s24, 15
      %p77 = por %p75, %p76
      %p78 = scmp.ne.s32.totalorder %s69, %s70
      %p79 = scmp.eq.s32.totalorder %s24, 0
      %p80 = por %p78, %p79
      %p81 = scmp.ne.s32.totalorder %s69, %s70
      %p82 = scmp.eq.s32.totalorder %s25, 15
      %p83 = por %p81, %p82
      %p85 = scmp.ne.s32.totalorder %s70, %s84
      %p86 = scmp.eq.s32.totalorder %s25, 0
      %p87 = por %p85, %p86
      %s89 = sadd.s32 %s88, 1
      %p92 = scmp.eq.s32.totalorder %s19, 15
      %p93 = scmp.ne.s32.totalorder %s88, %s90
      %p94 = scmp.eq.s32.totalorder %s19, 0
      %p95 = por %p93, %p94
      %p96 = scmp.ne.s32.totalorder %s88, %s90
      %p97 = scmp.eq.s32.totalorder %s24, 15
      %p98 = por %p96, %p97
      %p99 = scmp.ne.s32.totalorder %s90, %s91
      %p100 = scmp.eq.s32.totalorder %s24, 0
      %p101 = por %p99, %p100
      %p102 = scmp.ne.s32.totalorder %s90, %s91
      %p103 = scmp.eq.s32.totalorder %s25, 15
      %p104 = por %p102, %p103
      %p106 = scmp.ne.s32.totalorder %s91, %s105
      %p107 = scmp.eq.s32.totalorder %s25, 0
      %p108 = por %p106, %p107
      %s110 = sadd.s32 %s109, 1
      %p113 = scmp.eq.s32.totalorder %s19, 15
      %p114 = scmp.ne.s32.totalorder %s109, %s111
      %p115 = scmp.eq.s32.totalorder %s19, 0
      %p116 = por %p114, %p115
      %p117 = scmp.ne.s32.totalorder %s109, %s111
      %p118 = scmp.eq.s32.totalorder %s24, 15
      %p119 = por %p117, %p118
      %p120 = scmp.ne.s32.totalorder %s111, %s112
      %p121 = scmp.eq.s32.totalorder %s24, 0
      %p122 = por %p120, %p121
      %p123 = scmp.ne.s32.totalorder %s111, %s112
      %p124 = scmp.eq.s32.totalorder %s25, 15
      %p125 = por %p123, %p124
      %p127 = scmp.ne.s32.totalorder %s112, %s126
      %p128 = scmp.eq.s32.totalorder %s25, 0
      %p129 = por %p127, %p128
      %s131 = sadd.s32 %s130, 1
      %p134 = scmp.eq.s32.totalorder %s19, 15
      %p135 = scmp.ne.s32.totalorder %s130, %s132
      %p136 = scmp.eq.s32.totalorder %s19, 0
      %p137 = por %p135, %p136
      %p138 = scmp.ne.s32.totalorder %s130, %s132
      %p139 = scmp.eq.s32.totalorder %s24, 15
      %p140 = por %p138, %p139
      %p141 = scmp.ne.s32.totalorder %s132, %s133
      %p142 = scmp.eq.s32.totalorder %s24, 0
      %p143 = por %p141, %p142
      %p144 = scmp.ne.s32.totalorder %s132, %s133
      %p145 = scmp.eq.s32.totalorder %s25, 15
      %p146 = por %p144, %p145
      %p148 = scmp.ne.s32.totalorder %s133, %s147
      %p149 = scmp.eq.s32.totalorder %s25, 0
      %p150 = por %p148, %p149
      %s151 = ssub.s32 %s26, %s38
      %s152 = ssub.s32 %s27, %s34
      %s153 = sor.u32 %s151, %s152
      %p154 = scmp.eq.s32.totalorder %s153, 0
      %s156 = sadd.s32 %s155, 1
      %s157 = scalar_select %p154, %s155, %s156
      %p160 = pneg %p154
      %p161 = scmp.eq.s32.totalorder %s19, 15
      %p162 = por %p160, %p161
      %p163 = scmp.ne.s32.totalorder %s155, %s158
      %p164 = scmp.eq.s32.totalorder %s19, 0
      %p165 = por %p163, %p164
      %p166 = scmp.ne.s32.totalorder %s155, %s158
      %p167 = scmp.eq.s32.totalorder %s24, 15
      %p168 = por %p166, %p167
      %p169 = scmp.ne.s32.totalorder %s158, %s159
      %p170 = scmp.eq.s32.totalorder %s24, 0
      %p171 = por %p169, %p170
      %p172 = scmp.ne.s32.totalorder %s158, %s159
      %p173 = scmp.eq.s32.totalorder %s25, 15
      %p174 = por %p172, %p173
      %p176 = scmp.ne.s32.totalorder %s159, %s175
      %p177 = scmp.eq.s32.totalorder %s25, 0
      %p178 = por %p176, %p177
      %p179 = scmp.le.s32.totalorder 1, %s19
      %p180 = scmp.lt.s32.totalorder %s19, 17
      %p181 = pnand %p179, %p180
      %p182 = pneg %p181
      // Predicated region
      $region9: #{tpu_custom_call.1} parent=5 // pred_check
        _
      $region10: #{tpu_custom_call.1} parent=5 // pred_check_branch
        %184 = sbr.rel (%p181) target = $region12
      $region11: #{tpu_custom_call.1} parent=5 // pred_region
        %s185 = ssub.s32 %s19, 1
        // Predicated region
        $region13: #{tpu_custom_call.1} parent=11 // pred_check
          %p186 = pneg %p80
        $region14: #{tpu_custom_call.1} parent=11 // pred_check_branch
          %188 = sbr.rel (%p186) target = $region16
        $region15: #{tpu_custom_call.1} parent=11 // pred_region
          %s190 = ssub.s32 512, 512
          %191 = vsyncadd [#allocation9], %s190
          %s192 = sshll.u32 [#allocation8], 4
          %s193 = int_to_ptr.vmem [resolvable:$true] %s192
          %198 = dma.hbm_to_vmem [thread:$0]  %s2, 512, %s193, [#allocation9], 256, 256, 16
        $region16: #{tpu_custom_call.1} parent=11 // pred_fallthru
          _
        // Predicated region
        $region17: #{tpu_custom_call.1} parent=11 // pred_check
          %p199 = pneg %p101
        $region18: #{tpu_custom_call.1} parent=11 // pred_check_branch
          %201 = sbr.rel (%p199) target = $region20
        $region19: #{tpu_custom_call.1} parent=11 // pred_region
          _
        $region20: #{tpu_custom_call.1} parent=11 // pred_fallthru
          _
        // Predicated region
        $region21: #{tpu_custom_call.1} parent=11 // pred_check
          %p202 = pneg %p122
        $region22: #{tpu_custom_call.1} parent=11 // pred_check_branch
          %204 = sbr.rel (%p202) target = $region24
        $region23: #{tpu_custom_call.1} parent=11 // pred_region
          _
        $region24: #{tpu_custom_call.1} parent=11 // pred_fallthru
          _
        // Predicated region
        $region25: #{tpu_custom_call.1} parent=11 // pred_check
          %p205 = pneg %p143
        $region26: #{tpu_custom_call.1} parent=11 // pred_check_branch
          %207 = sbr.rel (%p205) target = $region28
        $region27: #{tpu_custom_call.1} parent=11 // pred_region
          _
        $region28: #{tpu_custom_call.1} parent=11 // pred_fallthru
          _
      $region12: #{tpu_custom_call.1} parent=5 // pred_fallthru
        _
      %p208 = scmp.lt.s32.totalorder %s19, 16
      // Predicated region
      $region29: #{tpu_custom_call.1} parent=5 // pred_check
        %p209 = pneg %p208
      $region30: #{tpu_custom_call.1} parent=5 // pred_check_branch
        %211 = sbr.rel (%p209) target = $region32
      $region31: #{tpu_custom_call.1} parent=5 // pred_region
        // Predicated region
        $region33: #{tpu_custom_call.1} parent=31 // pred_check
          %p212 = pneg %p53
        $region34: #{tpu_custom_call.1} parent=31 // pred_check_branch
          %214 = sbr.rel (%p212) target = $region36
        $region35: #{tpu_custom_call.1} parent=31 // pred_region
          %s215 = sand.u32 %s43, 1
          %s216 = scalar_lea.sflag [#allocation6], %s215
          %s217 = sand.u32 %s43, 1
          %s218 = smul.addr %s217, 8
          %s219 = scalar_lea.vmem [#allocation5], %s218
          %s221 = ssub.s32 128, 128
          %222 = vsyncadd %s216, %s221
          %s223 = smul.addr %s27, 2
          %s224 = smul.addr %s26, 16
          %s225 = sadd.s32 %s223, %s224
          %s226 = smul.addr %s225, 64
          %s227 = scalar_lea.hbm %s1, %s226
          %s228 = sshll.u32 %s219, 4
          %s229 = int_to_ptr.vmem [resolvable:$true] %s228
          %234 = dma.hbm_to_vmem [thread:$0]  %s227, 128, %s229, %s216, 64, 64, 4
        $region36: #{tpu_custom_call.1} parent=31 // pred_fallthru
          _
      $region32: #{tpu_custom_call.1} parent=5 // pred_fallthru
        _
      %p235 = scmp.le.s32.totalorder 1, %s19
      %p236 = scmp.lt.s32.totalorder %s19, 17
      %p237 = pnand %p235, %p236
      %p238 = pneg %p237
      // Predicated region
      $region37: #{tpu_custom_call.1} parent=5 // pred_check
        _
      $region38: #{tpu_custom_call.1} parent=5 // pred_check_branch
        %240 = sbr.rel (%p237) target = $region40
      $region39: #{tpu_custom_call.1} parent=5 // pred_region
        %s241 = ssub.s32 %s19, 1
        %s242 = sand.u32 %s46, 1
        %s243 = scalar_lea.sflag [#allocation6], %s242
        %s244 = sand.u32 %s46, 1
        %s245 = smul.addr %s244, 8
        %s246 = scalar_lea.vmem [#allocation5], %s245
        // Predicated region
        $region41: #{tpu_custom_call.1} parent=39 // pred_check
          %p247 = pneg %p59
        $region42: #{tpu_custom_call.1} parent=39 // pred_check_branch
          %249 = sbr.rel (%p247) target = $region44
        $region43: #{tpu_custom_call.1} parent=39 // pred_region
          %250 = dma.done %s243, 128
        $region44: #{tpu_custom_call.1} parent=39 // pred_fallthru
          _
        // Predicated region
        $region45: #{tpu_custom_call.1} parent=39 // pred_check
          %p251 = pneg %p80
        $region46: #{tpu_custom_call.1} parent=39 // pred_check_branch
          %253 = sbr.rel (%p251) target = $region48
        $region47: #{tpu_custom_call.1} parent=39 // pred_region
          %254 = dma.done [#allocation9], 512
        $region48: #{tpu_custom_call.1} parent=39 // pred_fallthru
          _
        %s255 = sand.u32 %s46, 1
        %s256 = scalar_lea.sflag [#allocation6], %s255
        %s257 = sand.u32 %s46, 1
        %s258 = smul.addr %s257, 8
        %s259 = scalar_lea.vmem [#allocation5], %s258
        %p260 = pneg %p59
        %p261 = pneg %p56
        %p262 = pneg %p80
        %p263 = pneg %p77
        %p264 = pneg %p101
        %p265 = pneg %p98
        %p266 = pneg %p122
        %p267 = pneg %p119
        %p268 = pneg %p143
        %p269 = pneg %p140
        %p270 = pneg %p171
        %p271 = pneg %p168
        %s272 = sand.u32 %s158, 1
        %s273 = scalar_lea.sflag [#allocation7], %s272
        %s274 = sand.u32 %s158, 1
        %s275 = smul.addr %s274, 4
        %s276 = scalar_lea.vmem [#allocation10], %s275
        %p278 = scmp.eq.s32.totalorder %s29, 0
        // Predicated region
        $region49: #{tpu_custom_call.1} parent=39 // pred_check
          %p279 = pneg %p278
        $region50: #{tpu_custom_call.1} parent=39 // pred_check_branch
          %281 = sbr.rel (%p279) target = $region52
        $region51: #{tpu_custom_call.1} parent=39 // pred_region
          %s282 = smul.u32 %s28, 40
          %s283 = smul.addr %s282, 64
          %s284 = scalar_lea.hbm %s0, %s283
          // Predicated region
          $region53: #{tpu_custom_call.1} parent=51 // pred_check
            _
          $region54: #{tpu_custom_call.1} parent=51 // pred_check_branch
            %286 = sbr.rel target = $region56
          $region55: #{tpu_custom_call.1} parent=51 // pred_region
            %287 = sst [smem:[#allocation13]] [#allocation12]
            %288 = sst [smem:[#allocation14]] [#allocation11]
          $region56: #{tpu_custom_call.1} parent=51 // pred_fallthru
            _
          %290 = shalt.err (0)
          %s292 = sshll.u32 [#allocation2], 4
          %s293 = int_to_ptr.vmem [resolvable:$true] %s292
          %295 = dma.hbm_to_vmem [thread:$0]  %s284, 256, %s293, [#allocation4]
          %s296 = sadd.s32 4, %s282
          %s297 = smul.addr %s296, 64
          %s298 = scalar_lea.hbm %s0, %s297
          %s299 = scalar_lea.vmem [#allocation2], 16
          %s300 = scalar_lea.sflag [#allocation4], 1
          // Predicated region
          $region57: #{tpu_custom_call.1} parent=51 // pred_check
            _
          $region58: #{tpu_custom_call.1} parent=51 // pred_check_branch
            %302 = sbr.rel target = $region60
          $region59: #{tpu_custom_call.1} parent=51 // pred_region
            %303 = sst [smem:[#allocation13]] [#allocation16]
            %304 = sst [smem:[#allocation14]] [#allocation15]
          $region60: #{tpu_custom_call.1} parent=51 // pred_fallthru
            _
          %306 = shalt.err (0)
          %s308 = sshll.u32 %s299, 4
          %s309 = int_to_ptr.vmem [resolvable:$true] %s308
          %311 = dma.hbm_to_vmem [thread:$0]  %s298, 256, %s309, %s300
          %s312 = sadd.s32 8, %s282
          %s313 = smul.addr %s312, 64
          %s314 = scalar_lea.hbm %s0, %s313
          %s315 = scalar_lea.vmem [#allocation2], 32
          %s316 = scalar_lea.sflag [#allocation4], 2
          // Predicated region
          $region61: #{tpu_custom_call.1} parent=51 // pred_check
            _
          $region62: #{tpu_custom_call.1} parent=51 // pred_check_branch
            %318 = sbr.rel target = $region64
          $region63: #{tpu_custom_call.1} parent=51 // pred_region
            %319 = sst [smem:[#allocation13]] [#allocation18]
            %320 = sst [smem:[#allocation14]] [#allocation17]
          $region64: #{tpu_custom_call.1} parent=51 // pred_fallthru
            _
          %322 = shalt.err (0)
          %s324 = sshll.u32 %s315, 4
          %s325 = int_to_ptr.vmem [resolvable:$true] %s324
          %327 = dma.hbm_to_vmem [thread:$0]  %s314, 256, %s325, %s316
        $region52: #{tpu_custom_call.1} parent=39 // pred_fallthru
          _
        %s328 = sadd.s32 %s29, 1
        %p329 = scmp.lt.s32.totalorder %s328, 8
        // Predicated region
        $region65: #{tpu_custom_call.1} parent=39 // pred_check
          %p330 = pneg %p329
        $region66: #{tpu_custom_call.1} parent=39 // pred_check_branch
          %332 = sbr.rel (%p330) target = $region68
        $region67: #{tpu_custom_call.1} parent=39 // pred_region
          %s333 = sadd.s32 %s29, 3
          %p334 = scmp.lt.s32.totalorder %s333, 0
          %s335 = ssub.s32 0, %s333
          %s336 = scalar_select %p334, %s335, %s333
          %s337 = sand.u32 %s336, 3
          %s338 = ssub.s32 0, %s337
          %s339 = scalar_select %p334, %s338, %s337
          %p340 = scmp.ne.s32.totalorder %s339, 0
          %p341 = scmp.lt.s32.totalorder %s339, 0
          %p342 = pnand %p341, %p340
          %p343 = pneg %p342
          %s344 = sadd.s32 %s339, 4
          %s345 = scalar_select %p343, %s344, %s339
          %s346 = smul.u32 %s333, 4
          %s347 = smul.u32 %s28, 40
          %s348 = sadd.s32 %s346, %s347
          %s349 = smul.addr %s348, 64
          %s350 = scalar_lea.hbm %s0, %s349
          %s351 = smul.u32 %s345, 4
          %s352 = smul.addr %s351, 4
          %s353 = scalar_lea.vmem [#allocation2], %s352
          %s354 = scalar_lea.sflag [#allocation4], %s345
          // Predicated region
          $region69: #{tpu_custom_call.1} parent=67 // pred_check
            _
          $region70: #{tpu_custom_call.1} parent=67 // pred_check_branch
            %356 = sbr.rel target = $region72
          $region71: #{tpu_custom_call.1} parent=67 // pred_region
            %357 = sst [smem:[#allocation13]] [#allocation20]
            %358 = sst [smem:[#allocation14]] [#allocation19]
          $region72: #{tpu_custom_call.1} parent=67 // pred_fallthru
            _
          %360 = shalt.err (0)
          %s362 = sshll.u32 %s353, 4
          %s363 = int_to_ptr.vmem [resolvable:$true] %s362
          %365 = dma.hbm_to_vmem [thread:$0]  %s350, 256, %s363, %s354
        $region68: #{tpu_custom_call.1} parent=39 // pred_fallthru
          _
        // Predicated region
        $region73: #{tpu_custom_call.1} parent=39 // pred_check
          %p366 = pneg %p278
        $region74: #{tpu_custom_call.1} parent=39 // pred_check_branch
          %368 = sbr.rel (%p366) target = $region76
        $region75: #{tpu_custom_call.1} parent=39 // pred_region
          %s369 = smul.u32 4, 2
          %s370 = smul.u32 %s369, 2
          %s371 = sshll.u32 %s370, 4
          %372 = dma.done [#allocation4], %s371
          %s373 = scalar_lea.sflag [#allocation4], 1
          %s374 = sshll.u32 %s370, 4
          %375 = dma.done %s373, %s374
        $region76: #{tpu_custom_call.1} parent=39 // pred_fallthru
          _
        %s376 = sadd.s32 %s29, 2
        %p377 = scmp.lt.s32.totalorder %s376, 0
        %s378 = ssub.s32 0, %s376
        %s379 = scalar_select %p377, %s378, %s376
        %s380 = sand.u32 %s379, 3
        %s381 = ssub.s32 0, %s380
        %s382 = scalar_select %p377, %s381, %s380
        %p383 = scmp.ne.s32.totalorder %s382, 0
        %p384 = scmp.lt.s32.totalorder %s382, 0
        %p385 = pnand %p384, %p383
        %p386 = pneg %p385
        %s387 = sadd.s32 %s382, 4
        %s388 = scalar_select %p386, %s387, %s382
        %s389 = smul.u32 %s388, 4
        %s390 = smul.addr %s389, 4
        %s391 = scalar_lea.vmem [#allocation2], %s390
        %s392 = scalar_lea.sflag [#allocation4], %s388
        %s393 = smul.u32 4, 2
        %s394 = smul.u32 %s393, 2
        %s395 = sshll.u32 %s394, 4
        %396 = dma.done %s392, %s395
        %p397 = scmp.lt.s32.totalorder %s29, 0
        %s398 = ssub.s32 0, %s29
        %s399 = scalar_select %p397, %s398, %s29
        %s400 = sand.u32 %s399, 3
        %s401 = ssub.s32 0, %s400
        %s402 = scalar_select %p397, %s401, %s400
        %p403 = scmp.ne.s32.totalorder %s402, 0
        %p404 = scmp.lt.s32.totalorder %s402, 0
        %p405 = pnand %p404, %p403
        %p406 = pneg %p405
        %s407 = sadd.s32 %s402, 4
        %s408 = scalar_select %p406, %s407, %s402
        %s409 = smul.u32 %s408, 4
        %s410 = smul.addr %s409, 4
        %s411 = scalar_lea.vmem [#allocation2], %s410
        %v412 = vld [vmem:[%s411] sm:$0xf]
        %v413 = vld [vmem:[%s411 + $0x8] sm:$0xf]
        %414 = vst [vmem:[#allocation3] sm:$0xf] %v412
        %415 = vst [vmem:[#allocation3 + $0x4] sm:$0xf] %v413
        %v416 = vld [vmem:[%s411] sm:$0xff]
        %v417 = vld [vmem:[%s411 + $0x8] sm:$0xff]
        %420 = vrot.lane.b32.xlu0 %v416, 127
        %v421 = vpop.permute.xlu0 %420
        %422 = vrot.lane.b32.xlu0 %v417, 127
        %v423 = vpop.permute.xlu0 %422
        %v424 = vrot.slane %v421, 4
        %v425 = vrot.slane %v423, 4
        %vm426 = vcmask 1039360
        %v427 = vsel %vm426, %v421, %v424
        %v428 = vsel %vm426, %v423, %v425
        %431 = vst [vmem:[#allocation3 + $0x8] sm:$0xf] %v427
        %432 = vst [vmem:[#allocation3 + $0xc] sm:$0xf] %v428
        %v433 = vld [vmem:[%s411] sm:$0xff]
        %v434 = vld [vmem:[%s411 + $0x8] sm:$0xff]
        %437 = vrot.lane.b32.xlu0 %v433, 126
        %v438 = vpop.permute.xlu0 %437
        %439 = vrot.lane.b32.xlu0 %v434, 126
        %v440 = vpop.permute.xlu0 %439
        %v441 = vrot.slane %v438, 4
        %v442 = vrot.slane %v440, 4
        %vm443 = vcmask 1031168
        %v444 = vsel %vm443, %v438, %v441
        %v445 = vsel %vm443, %v440, %v442
        %448 = vst [vmem:[#allocation3 + $0x10] sm:$0xf] %v444
        %449 = vst [vmem:[#allocation3 + $0x14] sm:$0xf] %v445
        %v450 = vld [vmem:[%s411] sm:$0xff]
        %v451 = vld [vmem:[%s411 + $0x8] sm:$0xff]
        %454 = vrot.lane.b32.xlu0 %v450, 118
        %v455 = vpop.permute.xlu0 %454
        %456 = vrot.lane.b32.xlu0 %v451, 118
        %v457 = vpop.permute.xlu0 %456
        %v458 = vrot.slane %v455, 4
        %v459 = vrot.slane %v457, 4
        %vm460 = vcmask 965632
        %v461 = vsel %vm460, %v455, %v458
        %v462 = vsel %vm460, %v457, %v459
        %465 = vst [vmem:[#allocation3 + $0x18] sm:$0xf] %v461
        %466 = vst [vmem:[#allocation3 + $0x1c] sm:$0xf] %v462
        %v467 = vld [vmem:[%s411] sm:$0xff]
        %v468 = vld [vmem:[%s411 + $0x8] sm:$0xff]
        %471 = vrot.lane.b32.xlu0 %v467, 117
        %v472 = vpop.permute.xlu0 %471
        %473 = vrot.lane.b32.xlu0 %v468, 117
        %v474 = vpop.permute.xlu0 %473
        %v475 = vrot.slane %v472, 4
        %v476 = vrot.slane %v474, 4
        %vm477 = vcmask 957440
        %v478 = vsel %vm477, %v472, %v475
        %v479 = vsel %vm477, %v474, %v476
        %482 = vst [vmem:[#allocation3 + $0x20] sm:$0xf] %v478
        %483 = vst [vmem:[#allocation3 + $0x24] sm:$0xf] %v479
        %v484 = vld [vmem:[%s411] sm:$0xff]
        %v485 = vld [vmem:[%s411 + $0x8] sm:$0xff]
        %488 = vrot.lane.b32.xlu0 %v484, 116
        %v489 = vpop.permute.xlu0 %488
        %490 = vrot.lane.b32.xlu0 %v485, 116
        %v491 = vpop.permute.xlu0 %490
        %v492 = vrot.slane %v489, 4
        %v493 = vrot.slane %v491, 4
        %vm494 = vcmask 949248
        %v495 = vsel %vm494, %v489, %v492
        %v496 = vsel %vm494, %v491, %v493
        %499 = vst [vmem:[#allocation3 + $0x28] sm:$0xf] %v495
        %500 = vst [vmem:[#allocation3 + $0x2c] sm:$0xf] %v496
        %v501 = vld [vmem:[%s411] sm:$0xff]
        %v502 = vld [vmem:[%s411 + $0x8] sm:$0xff]
        %505 = vrot.lane.b32.xlu0 %v501, 108
        %v506 = vpop.permute.xlu0 %505
        %507 = vrot.lane.b32.xlu0 %v502, 108
        %v508 = vpop.permute.xlu0 %507
        %v509 = vrot.slane %v506, 4
        %v510 = vrot.slane %v508, 4
        %vm511 = vcmask 883712
        %v512 = vsel %vm511, %v506, %v509
        %v513 = vsel %vm511, %v508, %v510
        %516 = vst [vmem:[#allocation3 + $0x30] sm:$0xf] %v512
        %517 = vst [vmem:[#allocation3 + $0x34] sm:$0xf] %v513
        %v518 = vld [vmem:[%s411] sm:$0xff]
        %v519 = vld [vmem:[%s411 + $0x8] sm:$0xff]
        %522 = vrot.lane.b32.xlu0 %v518, 107
        %v523 = vpop.permute.xlu0 %522
        %524 = vrot.lane.b32.xlu0 %v519, 107
        %v525 = vpop.permute.xlu0 %524
        %v526 = vrot.slane %v523, 4
        %v527 = vrot.slane %v525, 4
        %vm528 = vcmask 875520
        %v529 = vsel %vm528, %v523, %v526
        %v530 = vsel %vm528, %v525, %v527
        %533 = vst [vmem:[#allocation3 + $0x38] sm:$0xf] %v529
        %534 = vst [vmem:[#allocation3 + $0x3c] sm:$0xf] %v530
        %v535 = vld [vmem:[%s411] sm:$0xff]
        %v536 = vld [vmem:[%s411 + $0x8] sm:$0xff]
        %539 = vrot.lane.b32.xlu0 %v535, 106
        %v540 = vpop.permute.xlu0 %539
        %541 = vrot.lane.b32.xlu0 %v536, 106
        %v542 = vpop.permute.xlu0 %541
        %v543 = vrot.slane %v540, 4
        %v544 = vrot.slane %v542, 4
        %vm545 = vcmask 867328
        %v546 = vsel %vm545, %v540, %v543
        %v547 = vsel %vm545, %v542, %v544
        %550 = vst [vmem:[#allocation3 + $0x40] sm:$0xf] %v546
        %551 = vst [vmem:[#allocation3 + $0x44] sm:$0xf] %v547
        %p552 = scmp.lt.s32.totalorder %s328, 0
        %s553 = ssub.s32 0, %s328
        %s554 = scalar_select %p552, %s553, %s328
        %s555 = sand.u32 %s554, 3
        %s556 = ssub.s32 0, %s555
        %s557 = scalar_select %p552, %s556, %s555
        %p558 = scmp.ne.s32.totalorder %s557, 0
        %p559 = scmp.lt.s32.totalorder %s557, 0
        %p560 = pnand %p559, %p558
        %p561 = pneg %p560
        %s562 = sadd.s32 %s557, 4
        %s563 = scalar_select %p561, %s562, %s557
        %s564 = smul.u32 %s563, 4
        %s565 = smul.addr %s564, 4
        %s566 = scalar_lea.vmem [#allocation2], %s565
        %v567 = vld [vmem:[%s566] sm:$0xf]
        %v568 = vld [vmem:[%s566 + $0x8] sm:$0xf]
        %569 = vst [vmem:[#allocation3 + $0x48] sm:$0xf] %v567
        %570 = vst [vmem:[#allocation3 + $0x4c] sm:$0xf] %v568
        %v571 = vld [vmem:[%s566] sm:$0xff]
        %v572 = vld [vmem:[%s566 + $0x8] sm:$0xff]
        %575 = vrot.lane.b32.xlu0 %v571, 127
        %v576 = vpop.permute.xlu0 %575
        %577 = vrot.lane.b32.xlu0 %v572, 127
        %v578 = vpop.permute.xlu0 %577
        %v579 = vrot.slane %v576, 4
        %v580 = vrot.slane %v578, 4
        %v581 = vsel %vm426, %v576, %v579
        %v582 = vsel %vm426, %v578, %v580
        %585 = vst [vmem:[#allocation3 + $0x50] sm:$0xf] %v581
        %586 = vst [vmem:[#allocation3 + $0x54] sm:$0xf] %v582
        %v587 = vld [vmem:[%s566] sm:$0xff]
        %v588 = vld [vmem:[%s566 + $0x8] sm:$0xff]
        %591 = vrot.lane.b32.xlu0 %v587, 126
        %v592 = vpop.permute.xlu0 %591
        %593 = vrot.lane.b32.xlu0 %v588, 126
        %v594 = vpop.permute.xlu0 %593
        %v595 = vrot.slane %v592, 4
        %v596 = vrot.slane %v594, 4
        %v597 = vsel %vm443, %v592, %v595
        %v598 = vsel %vm443, %v594, %v596
        %601 = vst [vmem:[#allocation3 + $0x58] sm:$0xf] %v597
        %602 = vst [vmem:[#allocation3 + $0x5c] sm:$0xf] %v598
        %v603 = vld [vmem:[%s566] sm:$0xff]
        %v604 = vld [vmem:[%s566 + $0x8] sm:$0xff]
        %607 = vrot.lane.b32.xlu0 %v603, 118
        %v608 = vpop.permute.xlu0 %607
        %609 = vrot.lane.b32.xlu0 %v604, 118
        %v610 = vpop.permute.xlu0 %609
        %v611 = vrot.slane %v608, 4
        %v612 = vrot.slane %v610, 4
        %v613 = vsel %vm460, %v608, %v611
        %v614 = vsel %vm460, %v610, %v612
        %617 = vst [vmem:[#allocation3 + $0x60] sm:$0xf] %v613
        %618 = vst [vmem:[#allocation3 + $0x64] sm:$0xf] %v614
        %v619 = vld [vmem:[%s566] sm:$0xff]
        %v620 = vld [vmem:[%s566 + $0x8] sm:$0xff]
        %623 = vrot.lane.b32.xlu0 %v619, 117
        %v624 = vpop.permute.xlu0 %623
        %625 = vrot.lane.b32.xlu0 %v620, 117
        %v626 = vpop.permute.xlu0 %625
        %v627 = vrot.slane %v624, 4
        %v628 = vrot.slane %v626, 4
        %v629 = vsel %vm477, %v624, %v627
        %v630 = vsel %vm477, %v626, %v628
        %633 = vst [vmem:[#allocation3 + $0x68] sm:$0xf] %v629
        %634 = vst [vmem:[#allocation3 + $0x6c] sm:$0xf] %v630
        %v635 = vld [vmem:[%s566] sm:$0xff]
        %v636 = vld [vmem:[%s566 + $0x8] sm:$0xff]
        %639 = vrot.lane.b32.xlu0 %v635, 116
        %v640 = vpop.permute.xlu0 %639
        %641 = vrot.lane.b32.xlu0 %v636, 116
        %v642 = vpop.permute.xlu0 %641
        %v643 = vrot.slane %v640, 4
        %v644 = vrot.slane %v642, 4
        %v645 = vsel %vm494, %v640, %v643
        %v646 = vsel %vm494, %v642, %v644
        %649 = vst [vmem:[#allocation3 + $0x70] sm:$0xf] %v645
        %650 = vst [vmem:[#allocation3 + $0x74] sm:$0xf] %v646
        %v651 = vld [vmem:[%s566] sm:$0xff]
        %v652 = vld [vmem:[%s566 + $0x8] sm:$0xff]
        %655 = vrot.lane.b32.xlu0 %v651, 108
        %v656 = vpop.permute.xlu0 %655
        %657 = vrot.lane.b32.xlu0 %v652, 108
        %v658 = vpop.permute.xlu0 %657
        %v659 = vrot.slane %v656, 4
        %v660 = vrot.slane %v658, 4
        %v661 = vsel %vm511, %v656, %v659
        %v662 = vsel %vm511, %v658, %v660
        %665 = vst [vmem:[#allocation3 + $0x78] sm:$0xf] %v661
        %666 = vst [vmem:[#allocation3 + $0x7c] sm:$0xf] %v662
        %v667 = vld [vmem:[%s566] sm:$0xff]
        %v668 = vld [vmem:[%s566 + $0x8] sm:$0xff]
        %671 = vrot.lane.b32.xlu0 %v667, 107
        %v672 = vpop.permute.xlu0 %671
        %673 = vrot.lane.b32.xlu0 %v668, 107
        %v674 = vpop.permute.xlu0 %673
        %v675 = vrot.slane %v672, 4
        %v676 = vrot.slane %v674, 4
        %v677 = vsel %vm528, %v672, %v675
        %v678 = vsel %vm528, %v674, %v676
        %681 = vst [vmem:[#allocation3 + $0x80] sm:$0xf] %v677
        %682 = vst [vmem:[#allocation3 + $0x84] sm:$0xf] %v678
        %v683 = vld [vmem:[%s566] sm:$0xff]
        %v684 = vld [vmem:[%s566 + $0x8] sm:$0xff]
        %687 = vrot.lane.b32.xlu0 %v683, 106
        %v688 = vpop.permute.xlu0 %687
        %689 = vrot.lane.b32.xlu0 %v684, 106
        %v690 = vpop.permute.xlu0 %689
        %v691 = vrot.slane %v688, 4
        %v692 = vrot.slane %v690, 4
        %v693 = vsel %vm545, %v688, %v691
        %v694 = vsel %vm545, %v690, %v692
        %697 = vst [vmem:[#allocation3 + $0x88] sm:$0xf] %v693
        %698 = vst [vmem:[#allocation3 + $0x8c] sm:$0xf] %v694
        %v699 = vld [vmem:[%s391] sm:$0xf]
        %v700 = vld [vmem:[%s391 + $0x8] sm:$0xf]
        %701 = vst [vmem:[#allocation3 + $0x90] sm:$0xf] %v699
        %702 = vst [vmem:[#allocation3 + $0x94] sm:$0xf] %v700
        %v703 = vld [vmem:[%s391] sm:$0xff]
        %v704 = vld [vmem:[%s391 + $0x8] sm:$0xff]
        %707 = vrot.lane.b32.xlu0 %v703, 127
        %v708 = vpop.permute.xlu0 %707
        %709 = vrot.lane.b32.xlu0 %v704, 127
        %v710 = vpop.permute.xlu0 %709
        %v711 = vrot.slane %v708, 4
        %v712 = vrot.slane %v710, 4
        %v713 = vsel %vm426, %v708, %v711
        %v714 = vsel %vm426, %v710, %v712
        %717 = vst [vmem:[#allocation3 + $0x98] sm:$0xf] %v713
        %718 = vst [vmem:[#allocation3 + $0x9c] sm:$0xf] %v714
        %v719 = vld [vmem:[%s391] sm:$0xff]
        %v720 = vld [vmem:[%s391 + $0x8] sm:$0xff]
        %723 = vrot.lane.b32.xlu0 %v719, 126
        %v724 = vpop.permute.xlu0 %723
        %725 = vrot.lane.b32.xlu0 %v720, 126
        %v726 = vpop.permute.xlu0 %725
        %v727 = vrot.slane %v724, 4
        %v728 = vrot.slane %v726, 4
        %v729 = vsel %vm443, %v724, %v727
        %v730 = vsel %vm443, %v726, %v728
        %733 = vst [vmem:[#allocation3 + $0xa0] sm:$0xf] %v729
        %734 = vst [vmem:[#allocation3 + $0xa4] sm:$0xf] %v730
        %v735 = vld [vmem:[%s391] sm:$0xff]
        %v736 = vld [vmem:[%s391 + $0x8] sm:$0xff]
        %739 = vrot.lane.b32.xlu0 %v735, 118
        %v740 = vpop.permute.xlu0 %739
        %741 = vrot.lane.b32.xlu0 %v736, 118
        %v742 = vpop.permute.xlu0 %741
        %v743 = vrot.slane %v740, 4
        %v744 = vrot.slane %v742, 4
        %v745 = vsel %vm460, %v740, %v743
        %v746 = vsel %vm460, %v742, %v744
        %749 = vst [vmem:[#allocation3 + $0xa8] sm:$0xf] %v745
        %750 = vst [vmem:[#allocation3 + $0xac] sm:$0xf] %v746
        %v751 = vld [vmem:[%s391] sm:$0xff]
        %v752 = vld [vmem:[%s391 + $0x8] sm:$0xff]
        %755 = vrot.lane.b32.xlu0 %v751, 117
        %v756 = vpop.permute.xlu0 %755
        %757 = vrot.lane.b32.xlu0 %v752, 117
        %v758 = vpop.permute.xlu0 %757
        %v759 = vrot.slane %v756, 4
        %v760 = vrot.slane %v758, 4
        %v761 = vsel %vm477, %v756, %v759
        %v762 = vsel %vm477, %v758, %v760
        %765 = vst [vmem:[#allocation3 + $0xb0] sm:$0xf] %v761
        %766 = vst [vmem:[#allocation3 + $0xb4] sm:$0xf] %v762
        %v767 = vld [vmem:[%s391] sm:$0xff]
        %v768 = vld [vmem:[%s391 + $0x8] sm:$0xff]
        %771 = vrot.lane.b32.xlu0 %v767, 116
        %v772 = vpop.permute.xlu0 %771
        %773 = vrot.lane.b32.xlu0 %v768, 116
        %v774 = vpop.permute.xlu0 %773
        %v775 = vrot.slane %v772, 4
        %v776 = vrot.slane %v774, 4
        %v777 = vsel %vm494, %v772, %v775
        %v778 = vsel %vm494, %v774, %v776
        %781 = vst [vmem:[#allocation3 + $0xb8] sm:$0xf] %v777
        %782 = vst [vmem:[#allocation3 + $0xbc] sm:$0xf] %v778
        %v783 = vld [vmem:[%s391] sm:$0xff]
        %v784 = vld [vmem:[%s391 + $0x8] sm:$0xff]
        %787 = vrot.lane.b32.xlu0 %v783, 108
        %v788 = vpop.permute.xlu0 %787
        %789 = vrot.lane.b32.xlu0 %v784, 108
        %v790 = vpop.permute.xlu0 %789
        %v791 = vrot.slane %v788, 4
        %v792 = vrot.slane %v790, 4
        %v793 = vsel %vm511, %v788, %v791
        %v794 = vsel %vm511, %v790, %v792
        %797 = vst [vmem:[#allocation3 + $0xc0] sm:$0xf] %v793
        %798 = vst [vmem:[#allocation3 + $0xc4] sm:$0xf] %v794
        %v799 = vld [vmem:[%s391] sm:$0xff]
        %v800 = vld [vmem:[%s391 + $0x8] sm:$0xff]
        %803 = vrot.lane.b32.xlu0 %v799, 107
        %v804 = vpop.permute.xlu0 %803
        %805 = vrot.lane.b32.xlu0 %v800, 107
        %v806 = vpop.permute.xlu0 %805
        %v807 = vrot.slane %v804, 4
        %v808 = vrot.slane %v806, 4
        %v809 = vsel %vm528, %v804, %v807
        %v810 = vsel %vm528, %v806, %v808
        %813 = vst [vmem:[#allocation3 + $0xc8] sm:$0xf] %v809
        %814 = vst [vmem:[#allocation3 + $0xcc] sm:$0xf] %v810
        %v815 = vld [vmem:[%s391] sm:$0xff]
        %v816 = vld [vmem:[%s391 + $0x8] sm:$0xff]
        %819 = vrot.lane.b32.xlu0 %v815, 106
        %v820 = vpop.permute.xlu0 %819
        %821 = vrot.lane.b32.xlu0 %v816, 106
        %v822 = vpop.permute.xlu0 %821
        %v823 = vrot.slane %v820, 4
        %v824 = vrot.slane %v822, 4
        %v825 = vsel %vm545, %v820, %v823
        %v826 = vsel %vm545, %v822, %v824
        %829 = vst [vmem:[#allocation3 + $0xd0] sm:$0xf] %v825
        %830 = vst [vmem:[#allocation3 + $0xd4] sm:$0xf] %v826
        %v831 = vld [vmem:[#allocation8] sm:$0xff]
        %v832 = vld [vmem:[#allocation8 + $0x8] sm:$0xff]
        %v833 = vld [vmem:[#allocation8 + $0x10] sm:$0xff]
        %v834 = vld [vmem:[#allocation8 + $0x18] sm:$0xff]
        %v835 = vld [vmem:[#allocation3] sm:$0xf]
        %v836 = vld [vmem:[#allocation3 + $0x4] sm:$0xf]
        %v837 = vld [vmem:[#allocation3 + $0x8] sm:$0xf]
        %v838 = vld [vmem:[#allocation3 + $0xc] sm:$0xf]
        %v839 = vld [vmem:[#allocation3 + $0x10] sm:$0xf]
        %v840 = vld [vmem:[#allocation3 + $0x14] sm:$0xf]
        %v841 = vld [vmem:[#allocation3 + $0x18] sm:$0xf]
        %v842 = vld [vmem:[#allocation3 + $0x1c] sm:$0xf]
        %v843 = vld [vmem:[#allocation3 + $0x20] sm:$0xf]
        %v844 = vld [vmem:[#allocation3 + $0x24] sm:$0xf]
        %v845 = vld [vmem:[#allocation3 + $0x28] sm:$0xf]
        %v846 = vld [vmem:[#allocation3 + $0x2c] sm:$0xf]
        %v847 = vld [vmem:[#allocation3 + $0x30] sm:$0xf]
        %v848 = vld [vmem:[#allocation3 + $0x34] sm:$0xf]
        %v849 = vld [vmem:[#allocation3 + $0x38] sm:$0xf]
        %v850 = vld [vmem:[#allocation3 + $0x3c] sm:$0xf]
        %v851 = vld [vmem:[#allocation3 + $0x40] sm:$0xf]
        %v852 = vld [vmem:[#allocation3 + $0x44] sm:$0xf]
        %v853 = vld [vmem:[#allocation3 + $0x48] sm:$0xf]
        %v854 = vld [vmem:[#allocation3 + $0x4c] sm:$0xf]
        %v855 = vld [vmem:[#allocation3 + $0x50] sm:$0xf]
        %v856 = vld [vmem:[#allocation3 + $0x54] sm:$0xf]
        %v857 = vld [vmem:[#allocation3 + $0x58] sm:$0xf]
        %v858 = vld [vmem:[#allocation3 + $0x5c] sm:$0xf]
        %v859 = vld [vmem:[#allocation3 + $0x60] sm:$0xf]
        %v860 = vld [vmem:[#allocation3 + $0x64] sm:$0xf]
        %v861 = vld [vmem:[#allocation3 + $0x68] sm:$0xf]
        %v862 = vld [vmem:[#allocation3 + $0x6c] sm:$0xf]
        %v863 = vld [vmem:[#allocation3 + $0x70] sm:$0xf]
        %v864 = vld [vmem:[#allocation3 + $0x74] sm:$0xf]
        %v865 = vld [vmem:[#allocation3 + $0x78] sm:$0xf]
        %v866 = vld [vmem:[#allocation3 + $0x7c] sm:$0xf]
        %v867 = vld [vmem:[#allocation3 + $0x80] sm:$0xf]
        %v868 = vld [vmem:[#allocation3 + $0x84] sm:$0xf]
        %v869 = vld [vmem:[#allocation3 + $0x88] sm:$0xf]
        %v870 = vld [vmem:[#allocation3 + $0x8c] sm:$0xf]
        %v871 = vld [vmem:[#allocation3 + $0x90] sm:$0xf]
        %v872 = vld [vmem:[#allocation3 + $0x94] sm:$0xf]
        %v873 = vld [vmem:[#allocation3 + $0x98] sm:$0xf]
        %v874 = vld [vmem:[#allocation3 + $0x9c] sm:$0xf]
        %v875 = vld [vmem:[#allocation3 + $0xa0] sm:$0xf]
        %v876 = vld [vmem:[#allocation3 + $0xa4] sm:$0xf]
        %v877 = vld [vmem:[#allocation3 + $0xa8] sm:$0xf]
        %v878 = vld [vmem:[#allocation3 + $0xac] sm:$0xf]
        %v879 = vld [vmem:[#allocation3 + $0xb0] sm:$0xf]
        %v880 = vld [vmem:[#allocation3 + $0xb4] sm:$0xf]
        %v881 = vld [vmem:[#allocation3 + $0xb8] sm:$0xf]
        %v882 = vld [vmem:[#allocation3 + $0xbc] sm:$0xf]
        %v883 = vld [vmem:[#allocation3 + $0xc0] sm:$0xf]
        %v884 = vld [vmem:[#allocation3 + $0xc4] sm:$0xf]
        %v885 = vld [vmem:[#allocation3 + $0xc8] sm:$0xf]
        %v886 = vld [vmem:[#allocation3 + $0xcc] sm:$0xf]
        %v887 = vld [vmem:[#allocation3 + $0xd0] sm:$0xf]
        %v888 = vld [vmem:[#allocation3 + $0xd4] sm:$0xf]
        %v889 = vld [vmem:[%s3] sm:$0xff]
        %v890 = vld [vmem:[%s3 + $0x8] sm:$0xff]
        %892 = vset.pattern.permute.xlu0 0
        %893 = vperm.xlu0 %892, %v889
        %v894 = vpop.permute.xlu0 %893
        %897 = vset.pattern.permute.xlu0 0
        %898 = vperm.xlu0 %897, %v890
        %v899 = vpop.permute.xlu0 %898
        %v905 = vunpack.c.l.b16 %v831
        %v906 = vunpack.c.h.b16 %v831
        %v907 = vunpack.c.l.b16 %v832
        %v908 = vunpack.c.h.b16 %v832
        %v909 = vunpack.c.l.b16 %v833
        %v910 = vunpack.c.h.b16 %v833
        %v911 = vunpack.c.l.b16 %v834
        %v912 = vunpack.c.h.b16 %v834
        %v913 = vpack.c.b16 %v909, %v905
        %v914 = vpack.c.b16 %v910, %v906
        %v915 = vpack.c.b16 %v911, %v907
        %v916 = vpack.c.b16 %v912, %v908
        %v974 = vunpack.c.l.b16 %v835
        %v975 = vunpack.c.l.b16 %v836
        %v976 = vunpack.c.l.b16 %v837
        %v977 = vunpack.c.l.b16 %v838
        %v978 = vunpack.c.l.b16 %v839
        %v979 = vunpack.c.l.b16 %v840
        %v980 = vunpack.c.l.b16 %v841
        %v981 = vunpack.c.l.b16 %v842
        %v982 = vunpack.c.l.b16 %v843
        %v983 = vunpack.c.l.b16 %v844
        %v984 = vunpack.c.l.b16 %v845
        %v985 = vunpack.c.l.b16 %v846
        %v986 = vunpack.c.l.b16 %v847
        %v987 = vunpack.c.l.b16 %v848
        %v988 = vunpack.c.l.b16 %v849
        %v989 = vunpack.c.l.b16 %v850
        %v990 = vunpack.c.l.b16 %v851
        %v991 = vunpack.c.l.b16 %v852
        %v992 = vunpack.c.l.b16 %v853
        %v993 = vunpack.c.l.b16 %v854
        %v994 = vunpack.c.l.b16 %v855
        %v995 = vunpack.c.l.b16 %v856
        %v996 = vunpack.c.l.b16 %v857
        %v997 = vunpack.c.l.b16 %v858
        %v998 = vunpack.c.l.b16 %v859
        %v999 = vunpack.c.l.b16 %v860
        %v1000 = vunpack.c.l.b16 %v861
        %v1001 = vunpack.c.l.b16 %v862
        %v1002 = vunpack.c.l.b16 %v863
        %v1003 = vunpack.c.l.b16 %v864
        %v1004 = vunpack.c.l.b16 %v865
        %v1005 = vunpack.c.l.b16 %v866
        %v1006 = vunpack.c.l.b16 %v867
        %v1007 = vunpack.c.l.b16 %v868
        %v1008 = vunpack.c.l.b16 %v869
        %v1009 = vunpack.c.l.b16 %v870
        %v1010 = vunpack.c.l.b16 %v871
        %v1011 = vunpack.c.l.b16 %v872
        %v1012 = vunpack.c.l.b16 %v873
        %v1013 = vunpack.c.l.b16 %v874
        %v1014 = vunpack.c.l.b16 %v875
        %v1015 = vunpack.c.l.b16 %v876
        %v1016 = vunpack.c.l.b16 %v877
        %v1017 = vunpack.c.l.b16 %v878
        %v1018 = vunpack.c.l.b16 %v879
        %v1019 = vunpack.c.l.b16 %v880
        %v1020 = vunpack.c.l.b16 %v881
        %v1021 = vunpack.c.l.b16 %v882
        %v1022 = vunpack.c.l.b16 %v883
        %v1023 = vunpack.c.l.b16 %v884
        %v1024 = vunpack.c.l.b16 %v885
        %v1025 = vunpack.c.l.b16 %v886
        %v1026 = vunpack.c.l.b16 %v887
        %v1027 = vunpack.c.l.b16 %v888
        %v1028 = vpack.c.b16 %v975, %v974
        %v1029 = vpack.c.b16 %v977, %v976
        %v1030 = vpack.c.b16 %v979, %v978
        %v1031 = vpack.c.b16 %v981, %v980
        %v1032 = vpack.c.b16 %v983, %v982
        %v1033 = vpack.c.b16 %v985, %v984
        %v1034 = vpack.c.b16 %v987, %v986
        %v1035 = vpack.c.b16 %v989, %v988
        %v1036 = vpack.c.b16 %v991, %v990
        %v1037 = vpack.c.b16 %v993, %v992
        %v1038 = vpack.c.b16 %v995, %v994
        %v1039 = vpack.c.b16 %v997, %v996
        %v1040 = vpack.c.b16 %v999, %v998
        %v1041 = vpack.c.b16 %v1001, %v1000
        %v1042 = vpack.c.b16 %v1003, %v1002
        %v1043 = vpack.c.b16 %v1005, %v1004
        %v1044 = vpack.c.b16 %v1007, %v1006
        %v1045 = vpack.c.b16 %v1009, %v1008
        %v1046 = vpack.c.b16 %v1011, %v1010
        %v1047 = vpack.c.b16 %v1013, %v1012
        %v1048 = vpack.c.b16 %v1015, %v1014
        %v1049 = vpack.c.b16 %v1017, %v1016
        %v1050 = vpack.c.b16 %v1019, %v1018
        %v1051 = vpack.c.b16 %v1021, %v1020
        %v1052 = vpack.c.b16 %v1023, %v1022
        %v1053 = vpack.c.b16 %v1025, %v1024
        %v1054 = vpack.c.b16 %v1027, %v1026
        %vm1082 = vcmask 392192
        %v1084 = vsel %vm1082, %v916, 0
        %1086 = vmatprep.subr.bf16.mxu0 0
        %1087 = vmatpush1.bf16.msra.mxu0 %v1035
        %1088 = vmatprep.subr.bf16.mxu0 0
        %1089 = vmatpush1.bf16.msra.mxu0 %v1034
        %1090 = vmatprep.subr.bf16.mxu0 0
        %1091 = vmatpush1.bf16.msra.mxu0 %v1033
        %1092 = vmatprep.subr.bf16.mxu0 0
        %1093 = vmatpush1.bf16.msra.mxu0 %v1032
        %1094 = vmatprep.subr.bf16.mxu0 0
        %1095 = vmatpush1.bf16.msra.mxu0 %v1031
        %1096 = vmatprep.subr.bf16.mxu0 0
        %1097 = vmatpush1.bf16.msra.mxu0 %v1030
        %1098 = vmatprep.subr.bf16.mxu0 0
        %1099 = vmatpush1.bf16.msra.mxu0 %v1029
        %1100 = vmatprep.subr.bf16.mxu0 0
        %1101 = vmatpush1.bf16.msra.mxu0 %v1028
        %1102 = vmatprep.subr.bf16.mxu0 0
        %1103 = vmatpush2.bf16.msra.mxu0 %v1043
        %1104 = vmatprep.subr.bf16.mxu0 0
        %1105 = vmatpush2.bf16.msra.mxu0 %v1042
        %1106 = vmatprep.subr.bf16.mxu0 0
        %1107 = vmatpush2.bf16.msra.mxu0 %v1041
        %1108 = vmatprep.subr.bf16.mxu0 0
        %1109 = vmatpush2.bf16.msra.mxu0 %v1040
        %1110 = vmatprep.subr.bf16.mxu0 0
        %1111 = vmatpush2.bf16.msra.mxu0 %v1039
        %1112 = vmatprep.subr.bf16.mxu0 0
        %1113 = vmatpush2.bf16.msra.mxu0 %v1038
        %1114 = vmatprep.subr.bf16.mxu0 0
        %1115 = vmatpush2.bf16.msra.mxu0 %v1037
        %1116 = vmatprep.subr.bf16.mxu0 0
        %1117 = vmatpush2.bf16.msra.mxu0 %v1036
        %1118 = vmatprep.mubr.bf16.mxu0 %v914
        %1119 = vmatmul.mubr.bf16.gmra.mxu0 %v913
        %v1120 = vpop.f32.mrf.mxu0
        %v1121 = vadd.f32 %v894, %v1120
        %v1122 = vpop.f32.mrf.mxu0
        %v1123 = vpop.f32.mrf.mxu0
        %v1124 = vadd.f32 %v899, %v1123
        %v1125 = vpop.f32.mrf.mxu0
        %1126 = vdwg.mxu0
        %1127 = vmatprep.subr.bf16.mxu0 0
        %1128 = vmatpush1.bf16.msra.mxu0 %v1051
        %1129 = vmatprep.subr.bf16.mxu0 0
        %1130 = vmatpush1.bf16.msra.mxu0 %v1050
        %1131 = vmatprep.subr.bf16.mxu0 0
        %1132 = vmatpush1.bf16.msra.mxu0 %v1049
        %1133 = vmatprep.subr.bf16.mxu0 0
        %1134 = vmatpush1.bf16.msra.mxu0 %v1048
        %1135 = vmatprep.subr.bf16.mxu0 0
        %1136 = vmatpush1.bf16.msra.mxu0 %v1047
        %1137 = vmatprep.subr.bf16.mxu0 0
        %1138 = vmatpush1.bf16.msra.mxu0 %v1046
        %1139 = vmatprep.subr.bf16.mxu0 0
        %1140 = vmatpush1.bf16.msra.mxu0 %v1045
        %1141 = vmatprep.subr.bf16.mxu0 0
        %1142 = vmatpush1.bf16.msra.mxu0 %v1044
        %1143 = vmatprep.subr.bf16.mxu0 0
        %1144 = vmatpush2.bf16.msra.mxu0 0
        %1145 = vmatprep.subr.bf16.mxu0 0
        %1146 = vmatpush2.bf16.msra.mxu0 0
        %1147 = vmatprep.subr.bf16.mxu0 0
        %1148 = vmatpush2.bf16.msra.mxu0 0
        %1149 = vmatprep.subr.bf16.mxu0 0
        %1150 = vmatpush2.bf16.msra.mxu0 0
        %1151 = vmatprep.subr.bf16.mxu0 0
        %1152 = vmatpush2.bf16.msra.mxu0 0
        %1153 = vmatprep.subr.bf16.mxu0 0
        %1154 = vmatpush2.bf16.msra.mxu0 %v1054
        %1155 = vmatprep.subr.bf16.mxu0 0
        %1156 = vmatpush2.bf16.msra.mxu0 %v1053
        %1157 = vmatprep.subr.bf16.mxu0 0
        %1158 = vmatpush2.bf16.msra.mxu0 %v1052
        %1159 = vmatprep.mubr.bf16.mxu0 %v1084
        %1160 = vmatmul.mubr.bf16.gmra.mxu0 %v915
        %v1161 = vpop.f32.mrf.mxu0
        %v1162 = vadd.f32 %v1121, %v1161
        %v1163 = vpop.f32.mrf.mxu0
        %v1164 = vpop.f32.mrf.mxu0
        %v1165 = vadd.f32 %v1124, %v1164
        %v1166 = vpop.f32.mrf.mxu0
        %1167 = vdwg.mxu0
        %v1168 = vmax.f32 %v1162, 0.0
        %v1169 = vmax.f32 %v1165, 0.0
        %v1170 = vpack.c.bf16 %v1169, %v1168
        %v1171 = vld [vmem:[%s246] sm:$0xf]
        %v1172 = vld [vmem:[%s246 + $0x4] sm:$0xf]
        %v1173 = vmax.bf16 %v1171, 0
        %v1174 = vmax.bf16 %v1172, 0
        %v1177 = vunpack.c.l.b16 %v1173
        %v1178 = vunpack.c.l.b16 %v1174
        %v1179 = vpack.c.b16 %v1178, %v1177
        %v1181 = vld [vmem:[%s4] sm:$0xf]
        %v1182 = vld [vmem:[%s5] sm:$0xff]
        %1184 = vset.pattern.permute.xlu0 0
        %1185 = vperm.xlu0 %1184, %v1182
        %v1186 = vpop.permute.xlu0 %1185
        %vm1188 = vcmask 261120
        %v1190 = vsel %vm1188, %v1181, 0
        %1192 = vmatprep.subr.bf16.mxu0 0
        %1193 = vmatpush1.bf16.msra.mxu0 0
        %1194 = vmatprep.subr.bf16.mxu0 0
        %1195 = vmatpush1.bf16.msra.mxu0 0
        %1196 = vmatprep.subr.bf16.mxu0 0
        %1197 = vmatpush1.bf16.msra.mxu0 0
        %1198 = vmatprep.subr.bf16.mxu0 0
        %1199 = vmatpush1.bf16.msra.mxu0 0
        %1200 = vmatprep.subr.bf16.mxu0 0
        %1201 = vmatpush1.bf16.msra.mxu0 0
        %1202 = vmatprep.subr.bf16.mxu0 0
        %1203 = vmatpush1.bf16.msra.mxu0 0
        %1204 = vmatprep.subr.bf16.mxu0 0
        %1205 = vmatpush1.bf16.msra.mxu0 %v1170
        %1206 = vmatprep.subr.bf16.mxu0 0
        %1207 = vmatpush1.bf16.msra.mxu0 %v1179
        %1208 = vmatprep.subr.bf16.mxu0 0
        %1209 = vmatpush2.bf16.msra.mxu0 0
        %1210 = vmatprep.subr.bf16.mxu0 0
        %1211 = vmatpush2.bf16.msra.mxu0 0
        %1212 = vmatprep.subr.bf16.mxu0 0
        %1213 = vmatpush2.bf16.msra.mxu0 0
        %1214 = vmatprep.subr.bf16.mxu0 0
        %1215 = vmatpush2.bf16.msra.mxu0 0
        %1216 = vmatprep.subr.bf16.mxu0 0
        %1217 = vmatpush2.bf16.msra.mxu0 0
        %1218 = vmatprep.subr.bf16.mxu0 0
        %1219 = vmatpush2.bf16.msra.mxu0 0
        %1220 = vmatprep.subr.bf16.mxu0 0
        %1221 = vmatpush2.bf16.msra.mxu0 0
        %1222 = vmatprep.subr.bf16.mxu0 0
        %1223 = vmatpush2.bf16.msra.mxu0 0
        %1224 = vmatprep.mubr.bf16.mxu0 0
        %1225 = vmatmul.mubr.bf16.gmra.mxu0 %v1190
        %v1226 = vpop.f32.mrf.mxu0
        %v1227 = vadd.f32 %v1186, %v1226
        %v1228 = vpop.f32.mrf.mxu0
        %v1229 = vpop.f32.mrf.mxu0
        %v1230 = vpop.f32.mrf.mxu0
        %1231 = vdwg.mxu0
        %v1232 = vmax.f32 %v1227, 0.0
        %v1233 = vpack.c.bf16 %v1232, %v1232
        %1234 = vst [vmem:[%s276] sm:$0xf] %v1233
        %s1235 = sand.u32 %s158, 1
        %s1236 = scalar_lea.sflag [#allocation7], %s1235
        %s1237 = sand.u32 %s158, 1
        %s1238 = smul.addr %s1237, 4
        %s1239 = scalar_lea.vmem [#allocation10], %s1238
        // Predicated region
        $region77: #{tpu_custom_call.1} parent=39 // pred_check
          %p1240 = pneg %p168
        $region78: #{tpu_custom_call.1} parent=39 // pred_check_branch
          %1242 = sbr.rel (%p1240) target = $region80
        $region79: #{tpu_custom_call.1} parent=39 // pred_region
          %s1244 = ssub.s32 64, 64
          %1245 = vsyncadd %s1236, %s1244
          %s1246 = smul.addr %s28, 8
          %s1247 = sadd.s32 %s29, %s1246
          %s1248 = smul.addr %s1247, 64
          %s1249 = scalar_lea.hbm %s6, %s1248
          %s1251 = sshll.u32 %s1239, 4
          %s1252 = int_to_ptr.vmem [resolvable:$true] %s1251
          %1254 = dma.vmem_to_hbm [thread:$0]  %s1252, 64, %s1249, %s1236
        $region80: #{tpu_custom_call.1} parent=39 // pred_fallthru
          _
      $region40: #{tpu_custom_call.1} parent=5 // pred_fallthru
        _
      %p1255 = scmp.le.s32.totalorder 2, %s19
      // Predicated region
      $region81: #{tpu_custom_call.1} parent=5 // pred_check
        %p1256 = pneg %p1255
      $region82: #{tpu_custom_call.1} parent=5 // pred_check_branch
        %1258 = sbr.rel (%p1256) target = $region84
      $region83: #{tpu_custom_call.1} parent=5 // pred_region
        %s1259 = ssub.s32 %s19, 2
        // Predicated region
        $region85: #{tpu_custom_call.1} parent=83 // pred_check
          %p1260 = pneg %p174
        $region86: #{tpu_custom_call.1} parent=83 // pred_check_branch
          %1262 = sbr.rel (%p1260) target = $region88
        $region87: #{tpu_custom_call.1} parent=83 // pred_region
          %s1263 = sand.u32 %s159, 1
          %s1264 = scalar_lea.sflag [#allocation7], %s1263
          %s1265 = sand.u32 %s159, 1
          %s1266 = smul.addr %s1265, 4
          %s1267 = scalar_lea.vmem [#allocation10], %s1266
          %1268 = dma.done %s1264, 64
        $region88: #{tpu_custom_call.1} parent=83 // pred_fallthru
          _
      $region84: #{tpu_custom_call.1} parent=5 // pred_fallthru
        _
    $region6: #{tpu_custom_call.1} parent=1 // loop_footer
      %s23 = sadd.s32 1, %s19
    $region7: #{tpu_custom_call.1} parent=1 // loop_footer_branch
      %18 = sbr.rel target = $region3
    $region8: #{tpu_custom_call.1} parent=1 // loop_exit
      _
    %1269 = vsyncpa [#allocation6], 1
    %s1270 = scalar_lea.sflag [#allocation6], 1
    %1271 = vsyncpa %s1270, 1
    %1272 = vsyncpa [#allocation9], 1
    %1273 = vsyncpa [#allocation7], 1
    %s1274 = scalar_lea.sflag [#allocation7], 1
    %1275 = vsyncpa %s1274, 1
  %1276 = vsyncmov [#allocation4]
  %s1277 = vpop.sfrf %1276
  %p1278 = scmp.eq.s32.totalorder %s1277, 0
  %p1279 = pneg %p1278
  %1281 = shalt.err (%p1279)
  %s1282 = scalar_lea.sflag [#allocation4], 1
  %1283 = vsyncmov %s1282
  %s1284 = vpop.sfrf %1283
  %p1285 = scmp.eq.s32.totalorder %s1284, 0
  %p1286 = pneg %p1285
  %1288 = shalt.err (%p1286)
  %s1289 = scalar_lea.sflag [#allocation4], 2
  %1290 = vsyncmov %s1289
  %s1291 = vpop.sfrf %1290
  %p1292 = scmp.eq.s32.totalorder %s1291, 0
  %p1293 = pneg %p1292
  %1295 = shalt.err (%p1293)
  %s1296 = scalar_lea.sflag [#allocation4], 3
  %1297 = vsyncmov %s1296
  %s1298 = vpop.sfrf %1297
  %p1299 = scmp.eq.s32.totalorder %s1298, 0
  %p1300 = pneg %p1299
  %1302 = shalt.err (%p1300)

</llo_original>
